<compile_context>
chip_gen: v7x
topology: tpu7x:2x2x1
jax: 0.10.0
libtpu: 0.0.40
codegen_flags: <defaults>
</compile_context>

<pallas_src>
import functools

import jax
import jax.numpy as jnp
from jax.experimental import pallas as pl
from jax.experimental.pallas import tpu as pltpu

KERNEL_SIZE = 7
PADDING = 3  # kernel_size == 7 -> padding 3 (same as the PyTorch module)
_KK = KERNEL_SIZE * KERNEL_SIZE


def _round_up(v, m):
    return (v + m - 1) // m * m


def _spatial_attn_kernel(x_ref, w_ref, o_ref, pad_a_ref, pad_m_ref, *, W, off):
    """One batch block per grid step, fully lane-dense.

    x_ref     : (nb, C, H*W)            VMEM  input block (flattened spatial dim)
    w_ref     : (2*K*K,)                SMEM  conv taps  [avg-channel | max-channel]
    o_ref     : (nb, H*W)               VMEM  sigmoid(conv) output, lane-dense
    pad_*_ref : (nb, off + H*W + off)   VMEM  scratch; zero borders emulate Conv2d
                                              zero padding in the row (H) direction
    """
    nb, C, HW = x_ref.shape

    # ---- channel mean / max, lane-dense reductions over the VMEM block ------
    x = x_ref[...]                                       # (nb, C, HW) f32
    avg = jnp.sum(x, axis=1) * jnp.float32(1.0 / C)      # (nb, HW)
    mx = jnp.max(x, axis=1)                              # (nb, HW)

    # ---- refresh the flat zero-padded maps -----------------------------------
    # Borders are re-zeroed every step (tiny: 4 stores of (nb, off)); this keeps
    # the kernel correct under megacore grid sharding where a core may never run
    # grid step 0.  The 128-aligned interior store is a dense, unmasked vst.
    zero_border = jnp.zeros((nb, off), jnp.float32)
    pad_a_ref[:, :off] = zero_border
    pad_m_ref[:, :off] = zero_border
    pad_a_ref[:, off + HW:off + HW + off] = zero_border
    pad_m_ref[:, off + HW:off + HW + off] = zero_border
    pad_a_ref[:, off:off + HW] = avg
    pad_m_ref[:, off:off + HW] = mx

    # Column index of every flattened position -> masks for W-axis wraparound.
    col = jax.lax.broadcasted_iota(jnp.int32, (1, HW), 1) % W

    # ---- 7x7 conv as lane-offset slice + multiply-accumulate on the VPU ------
    # Tap (di, dj) reads the flat map at lane offset (di-3)*W + (dj-3).
    # Row overruns (di) fall into the zero borders; only column overruns (dj)
    # need an explicit mask (7 selects).  avg/max chains are kept independent.
    parts = []
    for dj in range(KERNEL_SIZE):
        dcol = dj - PADDING
        acc_a = None
        acc_m = None
        for di in range(KERNEL_SIZE):
            shift = (di - PADDING) * W + dcol
            a_sl = pad_a_ref[:, off + shift:off + shift + HW]
            m_sl = pad_m_ref[:, off + shift:off + shift + HW]
            tap = di * KERNEL_SIZE + dj
            ta = w_ref[tap] * a_sl
            tm = w_ref[_KK + tap] * m_sl
            acc_a = ta if acc_a is None else acc_a + ta
            acc_m = tm if acc_m is None else acc_m + tm
        part = acc_a + acc_m
        if dcol != 0:
            valid = jnp.logical_and(col + dcol >= 0, col + dcol < W)   # (1, HW)
            part = jnp.where(valid, part, 0.0)
        parts.append(part)

    # Tree-sum the 7 independent per-dj partials (short dependency chains).
    while len(parts) > 1:
        nxt = [parts[i] + parts[i + 1] for i in range(0, len(parts) - 1, 2)]
        if len(parts) % 2:
            nxt.append(parts[-1])
        parts = nxt

    o_ref[...] = jax.nn.sigmoid(parts[0]).astype(o_ref.dtype)


def _device_budget():
    """(is_v7x, vmem_budget_bytes, vmem_limit_bytes) tuned per generation."""
    try:
        kind = jax.devices()[0].device_kind.lower()
    except Exception:  # pragma: no cover - defensive
        kind = ""
    if "v7" in kind:
        # 64 MiB VMEM per TensorCore on v7x: leave generous headroom.
        return True, 40 << 20, 48 << 20
    # v5e / v6e: single TensorCore, 128 MiB VMEM -> grow blocks aggressively.
    return False, 88 << 20, 100 << 20


def _pick_batch_block(N, C, HW, pad_w, *, is_v7x, budget_bytes):
    """Largest nb dividing N whose *real* footprint (double-buffered input and
    output blocks plus both padded scratch maps) fits the budget.  On v7x,
    prefer an even number of grid steps so the two TensorCores stay balanced."""

    def footprint(nb):
        in_b = 2 * nb * C * HW * 4      # double-buffered input block
        out_b = 2 * nb * HW * 4         # double-buffered output block
        scr_b = 2 * nb * pad_w * 4      # two padded scratch maps
        return in_b + out_b + scr_b

    fitting = [nb for nb in range(1, N + 1)
               if N % nb == 0 and footprint(nb) <= budget_bytes]
    if not fitting:
        return 1
    if is_v7x:
        even_steps = [nb for nb in fitting if (N // nb) % 2 == 0]
        if even_steps:
            return max(even_steps)
    return max(fitting)


def spatial_attention_averagepool(x, weight, batch_block=None):
    """x: (N, C, H, W) float32; weight: (1, 2, K, K) float32 -> (N, 1, H, W)."""
    N, C, H, W = x.shape
    HW = H * W
    # Left/right zero borders of the flat map: must cover PADDING*(W+1) lanes;
    # keep them 128-aligned so the interior store is unmasked.
    off = _round_up(max(128, PADDING * (W + 1)), 128)
    pad_w = off + HW + off

    is_v7x, budget, vmem_limit = _device_budget()
    if batch_block is None:
        batch_block = _pick_batch_block(N, C, HW, pad_w,
                                        is_v7x=is_v7x, budget_bytes=budget)
    assert N % batch_block == 0, (N, batch_block)
    nb = batch_block

    x_flat = x.reshape(N, C, HW)          # free row-major view; lane-dense minor dim
    w_flat = weight.astype(jnp.float32).reshape(2 * _KK)

    kernel = functools.partial(_spatial_attn_kernel, W=W, off=off)

    out_flat = pl.pallas_call(
        kernel,
        out_shape=jax.ShapeDtypeStruct((N, HW), x.dtype),
        grid=(N // nb,),
        in_specs=[
            pl.BlockSpec((nb, C, HW), lambda n: (n, 0, 0)),
            pl.BlockSpec(memory_space=pltpu.MemorySpace.SMEM),
        ],
        out_specs=pl.BlockSpec((nb, HW), lambda n: (n, 0)),
        scratch_shapes=[
            pltpu.VMEM((nb, pad_w), jnp.float32),
            pltpu.VMEM((nb, pad_w), jnp.float32),
        ],
        compiler_params=pltpu.CompilerParams(
            dimension_semantics=("parallel",),
            vmem_limit_bytes=vmem_limit,
        ),
    )(x_flat, w_flat)

    return out_flat.reshape(N, 1, H, W)


def _reference(x, weight):
    """Pure-JAX reference mirroring the PyTorch forward."""
    avg_out = jnp.mean(x, axis=1, keepdims=True)
    max_out = jnp.max(x, axis=1, keepdims=True)
    feat = jnp.concatenate([avg_out, max_out], axis=1)          # (N, 2, H, W)
    out = jax.lax.conv_general_dilated(
        feat, weight, window_strides=(1, 1),
        padding=((PADDING, PADDING), (PADDING, PADDING)),
        dimension_numbers=("NCHW", "OIHW", "NCHW"))
    return jax.nn.sigmoid(out)


if __name__ == "__main__":
    key = jax.random.PRNGKey(0)
    kx, kw = jax.random.split(key)

    N, C, H, W = 2, 4, 16, 16
    x = jax.random.normal(kx, (N, C, H, W), dtype=jnp.float32)
    # Deterministic synthetic conv1 weight: Conv2d(2, 1, 7, bias=False) -> (1, 2, 7, 7)
    weight = 0.1 * jax.random.normal(kw, (1, 2, KERNEL_SIZE, KERNEL_SIZE),
                                     dtype=jnp.float32)

    ref = jax.block_until_ready(_reference(x, weight))

    # Auto-picked batch block (device-dependent).
    out = jax.block_until_ready(spatial_attention_averagepool(x, weight))
    assert out.shape == (N, 1, H, W), out.shape
    err = float(jnp.max(jnp.abs(out - ref)))
    assert jnp.allclose(out, ref, atol=1e-5, rtol=1e-5), err

    # Also exercise the multi-grid-step path explicitly (scratch reuse across steps).
    out_multi = jax.block_until_ready(
        spatial_attention_averagepool(x, weight, batch_block=1))
    err_m = float(jnp.max(jnp.abs(out_multi - ref)))
    assert jnp.allclose(out_multi, ref, atol=1e-5, rtol=1e-5), err_m

    print("KERNEL_OK")
</pallas_src>

<mosaic_0001>
module attributes {stable_mosaic.version = 11 : i64} {
  func.func @_spatial_attn_kernel(%arg0: i32, %arg1: memref<2x4x256xf32, #tpu.memory_space<vmem>>, %arg2: memref<98xf32, #tpu.memory_space<smem>>, %arg3: memref<2x256xf32, #tpu.memory_space<vmem>>, %arg4: memref<2x512xf32, #tpu.memory_space<vmem>>, %arg5: memref<2x512xf32, #tpu.memory_space<vmem>>) attributes {dimension_semantics = [#tpu.dimension_semantics<parallel>], iteration_bounds = array<i64: 1>, scalar_prefetch = 0 : i64, scratch_operands = 2 : i64, tpu.core_type = #tpu.core_type<tc>, window_params = [{transform_indices = @transform_0, window_bounds = array<i64: 2, 4, 256>}, {transform_indices = @transform_1, window_bounds = array<i64: 98>}, {transform_indices = @transform_2, window_bounds = array<i64: 2, 256>}]} {
    %c0 = arith.constant 0 : index
    %c0_0 = arith.constant 0 : index
    %c0_1 = arith.constant 0 : index
    %0 = vector.load %arg1[%c0, %c0_0, %c0_1] : memref<2x4x256xf32, #tpu.memory_space<vmem>>, vector<2x4x256xf32>
    %cst = arith.constant dense<0.000000e+00> : vector<2x256xf32>
    %1 = vector.multi_reduction <add>, %0, %cst [1] : vector<2x4x256xf32> to vector<2x256xf32>
    %cst_2 = arith.constant 2.500000e-01 : f32
    %2 = vector.broadcast %cst_2 : f32 to vector<2x256xf32>
    %3 = arith.mulf %1, %2 : vector<2x256xf32>
    %cst_3 = arith.constant dense<0xFF800000> : vector<2x256xf32>
    %4 = vector.multi_reduction <maximumf>, %0, %cst_3 [1] : vector<2x4x256xf32> to vector<2x256xf32>
    %cst_4 = arith.constant 0.000000e+00 : f32
    %5 = vector.broadcast %cst_4 : f32 to vector<2x128xf32>
    %c0_5 = arith.constant 0 : index
    %c0_6 = arith.constant 0 : index
    %6 = vector.load %arg4[%c0_5, %c0_6] : memref<2x512xf32, #tpu.memory_space<vmem>>, vector<2x128xf32>
    tpu.vector_store %arg4[%c0_5, %c0_6], %5 {strides = array<i32>} : memref<2x512xf32, #tpu.memory_space<vmem>>, vector<2x128xf32>,
    %c0_7 = arith.constant 0 : index
    %c0_8 = arith.constant 0 : index
    %7 = vector.load %arg5[%c0_7, %c0_8] : memref<2x512xf32, #tpu.memory_space<vmem>>, vector<2x128xf32>
    tpu.vector_store %arg5[%c0_7, %c0_8], %5 {strides = array<i32>} : memref<2x512xf32, #tpu.memory_space<vmem>>, vector<2x128xf32>,
    %c0_9 = arith.constant 0 : index
    %c384 = arith.constant 384 : index
    %8 = vector.load %arg4[%c0_9, %c384] : memref<2x512xf32, #tpu.memory_space<vmem>>, vector<2x128xf32>
    tpu.vector_store %arg4[%c0_9, %c384], %5 {strides = array<i32>} : memref<2x512xf32, #tpu.memory_space<vmem>>, vector<2x128xf32>,
    %c0_10 = arith.constant 0 : index
    %c384_11 = arith.constant 384 : index
    %9 = vector.load %arg5[%c0_10, %c384_11] : memref<2x512xf32, #tpu.memory_space<vmem>>, vector<2x128xf32>
    tpu.vector_store %arg5[%c0_10, %c384_11], %5 {strides = array<i32>} : memref<2x512xf32, #tpu.memory_space<vmem>>, vector<2x128xf32>,
    %c0_12 = arith.constant 0 : index
    %c128 = arith.constant 128 : index
    %10 = vector.load %arg4[%c0_12, %c128] : memref<2x512xf32, #tpu.memory_space<vmem>>, vector<2x256xf32>
    tpu.vector_store %arg4[%c0_12, %c128], %3 {strides = array<i32>} : memref<2x512xf32, #tpu.memory_space<vmem>>, vector<2x256xf32>,
    %c0_13 = arith.constant 0 : index
    %c128_14 = arith.constant 128 : index
    %11 = vector.load %arg5[%c0_13, %c128_14] : memref<2x512xf32, #tpu.memory_space<vmem>>, vector<2x256xf32>
    tpu.vector_store %arg5[%c0_13, %c128_14], %4 {strides = array<i32>} : memref<2x512xf32, #tpu.memory_space<vmem>>, vector<2x256xf32>,
    %12 = tpu.iota {dimensions = array<i32: 1>} : vector<1x256xi32>
    %c16_i32 = arith.constant 16 : i32
    %c0_i32 = arith.constant 0 : i32
    %13 = arith.cmpi eq, %c16_i32, %c0_i32 : i32
    %c1_i32 = arith.constant 1 : i32
    %14 = arith.select %13, %c1_i32, %c16_i32 : i32
    %15 = vector.broadcast %14 : i32 to vector<1x256xi32>
    %16 = arith.remsi %12, %15 : vector<1x256xi32>
    %c0_i32_15 = arith.constant 0 : i32
    %17 = vector.broadcast %c0_i32_15 : i32 to vector<1x256xi32>
    %18 = arith.cmpi ne, %16, %17 : vector<1x256xi32>
    %c0_i32_16 = arith.constant 0 : i32
    %19 = vector.broadcast %c0_i32_16 : i32 to vector<1x256xi32>
    %20 = arith.cmpi slt, %16, %19 : vector<1x256xi32>
    %c0_i32_17 = arith.constant 0 : i32
    %21 = arith.cmpi slt, %14, %c0_i32_17 : i32
    %22 = vector.broadcast %21 : i1 to vector<1x256xi1>
    %23 = vector.broadcast %22 : vector<1x256xi1> to vector<1x256xi1>
    %24 = arith.xori %20, %23 : vector<1x256xi1>
    %25 = arith.andi %24, %18 : vector<1x256xi1>
    %26 = vector.broadcast %14 : i32 to vector<1x256xi32>
    %27 = arith.addi %16, %26 : vector<1x256xi32>
    %28 = arith.select %25, %27, %16 : vector<1x256xi1>, vector<1x256xi32>
    %c0_18 = arith.constant 0 : index
    %c77 = arith.constant 77 : index
    %29 = vector.load %arg4[%c0_18, %c77] : memref<2x512xf32, #tpu.memory_space<vmem>>, vector<2x256xf32>
    %c0_19 = arith.constant 0 : index
    %c77_20 = arith.constant 77 : index
    %30 = vector.load %arg5[%c0_19, %c77_20] : memref<2x512xf32, #tpu.memory_space<vmem>>, vector<2x256xf32>
    %c0_21 = arith.constant 0 : index
    %31 = memref.load %arg2[%c0_21] : memref<98xf32, #tpu.memory_space<smem>>
    %32 = vector.broadcast %31 : f32 to vector<2x256xf32>
    %33 = arith.mulf %32, %29 : vector<2x256xf32>
    %c49 = arith.constant 49 : index
    %34 = memref.load %arg2[%c49] : memref<98xf32, #tpu.memory_space<smem>>
    %35 = vector.broadcast %34 : f32 to vector<2x256xf32>
    %36 = arith.mulf %35, %30 : vector<2x256xf32>
    %c0_22 = arith.constant 0 : index
    %c93 = arith.constant 93 : index
    %37 = vector.load %arg4[%c0_22, %c93] : memref<2x512xf32, #tpu.memory_space<vmem>>, vector<2x256xf32>
    %c0_23 = arith.constant 0 : index
    %c93_24 = arith.constant 93 : index
    %38 = vector.load %arg5[%c0_23, %c93_24] : memref<2x512xf32, #tpu.memory_space<vmem>>, vector<2x256xf32>
    %c7 = arith.constant 7 : index
    %39 = memref.load %arg2[%c7] : memref<98xf32, #tpu.memory_space<smem>>
    %40 = vector.broadcast %39 : f32 to vector<2x256xf32>
    %41 = arith.mulf %40, %37 : vector<2x256xf32>
    %c56 = arith.constant 56 : index
    %42 = memref.load %arg2[%c56] : memref<98xf32, #tpu.memory_space<smem>>
    %43 = vector.broadcast %42 : f32 to vector<2x256xf32>
    %44 = arith.mulf %43, %38 : vector<2x256xf32>
    %45 = arith.addf %33, %41 : vector<2x256xf32>
    %46 = arith.addf %36, %44 : vector<2x256xf32>
    %c0_25 = arith.constant 0 : index
    %c109 = arith.constant 109 : index
    %47 = vector.load %arg4[%c0_25, %c109] : memref<2x512xf32, #tpu.memory_space<vmem>>, vector<2x256xf32>
    %c0_26 = arith.constant 0 : index
    %c109_27 = arith.constant 109 : index
    %48 = vector.load %arg5[%c0_26, %c109_27] : memref<2x512xf32, #tpu.memory_space<vmem>>, vector<2x256xf32>
    %c14 = arith.constant 14 : index
    %49 = memref.load %arg2[%c14] : memref<98xf32, #tpu.memory_space<smem>>
    %50 = vector.broadcast %49 : f32 to vector<2x256xf32>
    %51 = arith.mulf %50, %47 : vector<2x256xf32>
    %c63 = arith.constant 63 : index
    %52 = memref.load %arg2[%c63] : memref<98xf32, #tpu.memory_space<smem>>
    %53 = vector.broadcast %52 : f32 to vector<2x256xf32>
    %54 = arith.mulf %53, %48 : vector<2x256xf32>
    %55 = arith.addf %45, %51 : vector<2x256xf32>
    %56 = arith.addf %46, %54 : vector<2x256xf32>
    %c0_28 = arith.constant 0 : index
    %c125 = arith.constant 125 : index
    %57 = vector.load %arg4[%c0_28, %c125] : memref<2x512xf32, #tpu.memory_space<vmem>>, vector<2x256xf32>
    %c0_29 = arith.constant 0 : index
    %c125_30 = arith.constant 125 : index
    %58 = vector.load %arg5[%c0_29, %c125_30] : memref<2x512xf32, #tpu.memory_space<vmem>>, vector<2x256xf32>
    %c21 = arith.constant 21 : index
    %59 = memref.load %arg2[%c21] : memref<98xf32, #tpu.memory_space<smem>>
    %60 = vector.broadcast %59 : f32 to vector<2x256xf32>
    %61 = arith.mulf %60, %57 : vector<2x256xf32>
    %c70 = arith.constant 70 : index
    %62 = memref.load %arg2[%c70] : memref<98xf32, #tpu.memory_space<smem>>
    %63 = vector.broadcast %62 : f32 to vector<2x256xf32>
    %64 = arith.mulf %63, %58 : vector<2x256xf32>
    %65 = arith.addf %55, %61 : vector<2x256xf32>
    %66 = arith.addf %56, %64 : vector<2x256xf32>
    %c0_31 = arith.constant 0 : index
    %c141 = arith.constant 141 : index
    %67 = vector.load %arg4[%c0_31, %c141] : memref<2x512xf32, #tpu.memory_space<vmem>>, vector<2x256xf32>
    %c0_32 = arith.constant 0 : index
    %c141_33 = arith.constant 141 : index
    %68 = vector.load %arg5[%c0_32, %c141_33] : memref<2x512xf32, #tpu.memory_space<vmem>>, vector<2x256xf32>
    %c28 = arith.constant 28 : index
    %69 = memref.load %arg2[%c28] : memref<98xf32, #tpu.memory_space<smem>>
    %70 = vector.broadcast %69 : f32 to vector<2x256xf32>
    %71 = arith.mulf %70, %67 : vector<2x256xf32>
    %c77_34 = arith.constant 77 : index
    %72 = memref.load %arg2[%c77_34] : memref<98xf32, #tpu.memory_space<smem>>
    %73 = vector.broadcast %72 : f32 to vector<2x256xf32>
    %74 = arith.mulf %73, %68 : vector<2x256xf32>
    %75 = arith.addf %65, %71 : vector<2x256xf32>
    %76 = arith.addf %66, %74 : vector<2x256xf32>
    %c0_35 = arith.constant 0 : index
    %c157 = arith.constant 157 : index
    %77 = vector.load %arg4[%c0_35, %c157] : memref<2x512xf32, #tpu.memory_space<vmem>>, vector<2x256xf32>
    %c0_36 = arith.constant 0 : index
    %c157_37 = arith.constant 157 : index
    %78 = vector.load %arg5[%c0_36, %c157_37] : memref<2x512xf32, #tpu.memory_space<vmem>>, vector<2x256xf32>
    %c35 = arith.constant 35 : index
    %79 = memref.load %arg2[%c35] : memref<98xf32, #tpu.memory_space<smem>>
    %80 = vector.broadcast %79 : f32 to vector<2x256xf32>
    %81 = arith.mulf %80, %77 : vector<2x256xf32>
    %c84 = arith.constant 84 : index
    %82 = memref.load %arg2[%c84] : memref<98xf32, #tpu.memory_space<smem>>
    %83 = vector.broadcast %82 : f32 to vector<2x256xf32>
    %84 = arith.mulf %83, %78 : vector<2x256xf32>
    %85 = arith.addf %75, %81 : vector<2x256xf32>
    %86 = arith.addf %76, %84 : vector<2x256xf32>
    %c0_38 = arith.constant 0 : index
    %c173 = arith.constant 173 : index
    %87 = vector.load %arg4[%c0_38, %c173] : memref<2x512xf32, #tpu.memory_space<vmem>>, vector<2x256xf32>
    %c0_39 = arith.constant 0 : index
    %c173_40 = arith.constant 173 : index
    %88 = vector.load %arg5[%c0_39, %c173_40] : memref<2x512xf32, #tpu.memory_space<vmem>>, vector<2x256xf32>
    %c42 = arith.constant 42 : index
    %89 = memref.load %arg2[%c42] : memref<98xf32, #tpu.memory_space<smem>>
    %90 = vector.broadcast %89 : f32 to vector<2x256xf32>
    %91 = arith.mulf %90, %87 : vector<2x256xf32>
    %c91 = arith.constant 91 : index
    %92 = memref.load %arg2[%c91] : memref<98xf32, #tpu.memory_space<smem>>
    %93 = vector.broadcast %92 : f32 to vector<2x256xf32>
    %94 = arith.mulf %93, %88 : vector<2x256xf32>
    %95 = arith.addf %85, %91 : vector<2x256xf32>
    %96 = arith.addf %86, %94 : vector<2x256xf32>
    %97 = arith.addf %95, %96 : vector<2x256xf32>
    %c-3_i32 = arith.constant -3 : i32
    %98 = vector.broadcast %c-3_i32 : i32 to vector<1x256xi32>
    %99 = arith.addi %28, %98 : vector<1x256xi32>
    %c0_i32_41 = arith.constant 0 : i32
    %100 = vector.broadcast %c0_i32_41 : i32 to vector<1x256xi32>
    %101 = arith.cmpi sge, %99, %100 : vector<1x256xi32>
    %c-3_i32_42 = arith.constant -3 : i32
    %102 = vector.broadcast %c-3_i32_42 : i32 to vector<1x256xi32>
    %103 = arith.addi %28, %102 : vector<1x256xi32>
    %c16_i32_43 = arith.constant 16 : i32
    %104 = vector.broadcast %c16_i32_43 : i32 to vector<1x256xi32>
    %105 = arith.cmpi slt, %103, %104 : vector<1x256xi32>
    %106 = arith.andi %101, %105 : vector<1x256xi1>
    %cst_44 = arith.constant 0.000000e+00 : f32
    %107 = vector.shape_cast %106 : vector<1x256xi1> to vector<1x256xi1>
    %108 = vector.broadcast %107 : vector<1x256xi1> to vector<2x256xi1>
    %109 = vector.broadcast %cst_44 : f32 to vector<2x256xf32>
    %110 = arith.select %108, %97, %109 : vector<2x256xi1>, vector<2x256xf32>
    %c0_45 = arith.constant 0 : index
    %c78 = arith.constant 78 : index
    %111 = vector.load %arg4[%c0_45, %c78] : memref<2x512xf32, #tpu.memory_space<vmem>>, vector<2x256xf32>
    %c0_46 = arith.constant 0 : index
    %c78_47 = arith.constant 78 : index
    %112 = vector.load %arg5[%c0_46, %c78_47] : memref<2x512xf32, #tpu.memory_space<vmem>>, vector<2x256xf32>
    %c1 = arith.constant 1 : index
    %113 = memref.load %arg2[%c1] : memref<98xf32, #tpu.memory_space<smem>>
    %114 = vector.broadcast %113 : f32 to vector<2x256xf32>
    %115 = arith.mulf %114, %111 : vector<2x256xf32>
    %c50 = arith.constant 50 : index
    %116 = memref.load %arg2[%c50] : memref<98xf32, #tpu.memory_space<smem>>
    %117 = vector.broadcast %116 : f32 to vector<2x256xf32>
    %118 = arith.mulf %117, %112 : vector<2x256xf32>
    %c0_48 = arith.constant 0 : index
    %c94 = arith.constant 94 : index
    %119 = vector.load %arg4[%c0_48, %c94] : memref<2x512xf32, #tpu.memory_space<vmem>>, vector<2x256xf32>
    %c0_49 = arith.constant 0 : index
    %c94_50 = arith.constant 94 : index
    %120 = vector.load %arg5[%c0_49, %c94_50] : memref<2x512xf32, #tpu.memory_space<vmem>>, vector<2x256xf32>
    %c8 = arith.constant 8 : index
    %121 = memref.load %arg2[%c8] : memref<98xf32, #tpu.memory_space<smem>>
    %122 = vector.broadcast %121 : f32 to vector<2x256xf32>
    %123 = arith.mulf %122, %119 : vector<2x256xf32>
    %c57 = arith.constant 57 : index
    %124 = memref.load %arg2[%c57] : memref<98xf32, #tpu.memory_space<smem>>
    %125 = vector.broadcast %124 : f32 to vector<2x256xf32>
    %126 = arith.mulf %125, %120 : vector<2x256xf32>
    %127 = arith.addf %115, %123 : vector<2x256xf32>
    %128 = arith.addf %118, %126 : vector<2x256xf32>
    %c0_51 = arith.constant 0 : index
    %c110 = arith.constant 110 : index
    %129 = vector.load %arg4[%c0_51, %c110] : memref<2x512xf32, #tpu.memory_space<vmem>>, vector<2x256xf32>
    %c0_52 = arith.constant 0 : index
    %c110_53 = arith.constant 110 : index
    %130 = vector.load %arg5[%c0_52, %c110_53] : memref<2x512xf32, #tpu.memory_space<vmem>>, vector<2x256xf32>
    %c15 = arith.constant 15 : index
    %131 = memref.load %arg2[%c15] : memref<98xf32, #tpu.memory_space<smem>>
    %132 = vector.broadcast %131 : f32 to vector<2x256xf32>
    %133 = arith.mulf %132, %129 : vector<2x256xf32>
    %c64 = arith.constant 64 : index
    %134 = memref.load %arg2[%c64] : memref<98xf32, #tpu.memory_space<smem>>
    %135 = vector.broadcast %134 : f32 to vector<2x256xf32>
    %136 = arith.mulf %135, %130 : vector<2x256xf32>
    %137 = arith.addf %127, %133 : vector<2x256xf32>
    %138 = arith.addf %128, %136 : vector<2x256xf32>
    %c0_54 = arith.constant 0 : index
    %c126 = arith.constant 126 : index
    %139 = vector.load %arg4[%c0_54, %c126] : memref<2x512xf32, #tpu.memory_space<vmem>>, vector<2x256xf32>
    %c0_55 = arith.constant 0 : index
    %c126_56 = arith.constant 126 : index
    %140 = vector.load %arg5[%c0_55, %c126_56] : memref<2x512xf32, #tpu.memory_space<vmem>>, vector<2x256xf32>
    %c22 = arith.constant 22 : index
    %141 = memref.load %arg2[%c22] : memref<98xf32, #tpu.memory_space<smem>>
    %142 = vector.broadcast %141 : f32 to vector<2x256xf32>
    %143 = arith.mulf %142, %139 : vector<2x256xf32>
    %c71 = arith.constant 71 : index
    %144 = memref.load %arg2[%c71] : memref<98xf32, #tpu.memory_space<smem>>
    %145 = vector.broadcast %144 : f32 to vector<2x256xf32>
    %146 = arith.mulf %145, %140 : vector<2x256xf32>
    %147 = arith.addf %137, %143 : vector<2x256xf32>
    %148 = arith.addf %138, %146 : vector<2x256xf32>
    %c0_57 = arith.constant 0 : index
    %c142 = arith.constant 142 : index
    %149 = vector.load %arg4[%c0_57, %c142] : memref<2x512xf32, #tpu.memory_space<vmem>>, vector<2x256xf32>
    %c0_58 = arith.constant 0 : index
    %c142_59 = arith.constant 142 : index
    %150 = vector.load %arg5[%c0_58, %c142_59] : memref<2x512xf32, #tpu.memory_space<vmem>>, vector<2x256xf32>
    %c29 = arith.constant 29 : index
    %151 = memref.load %arg2[%c29] : memref<98xf32, #tpu.memory_space<smem>>
    %152 = vector.broadcast %151 : f32 to vector<2x256xf32>
    %153 = arith.mulf %152, %149 : vector<2x256xf32>
    %c78_60 = arith.constant 78 : index
    %154 = memref.load %arg2[%c78_60] : memref<98xf32, #tpu.memory_space<smem>>
    %155 = vector.broadcast %154 : f32 to vector<2x256xf32>
    %156 = arith.mulf %155, %150 : vector<2x256xf32>
    %157 = arith.addf %147, %153 : vector<2x256xf32>
    %158 = arith.addf %148, %156 : vector<2x256xf32>
    %c0_61 = arith.constant 0 : index
    %c158 = arith.constant 158 : index
    %159 = vector.load %arg4[%c0_61, %c158] : memref<2x512xf32, #tpu.memory_space<vmem>>, vector<2x256xf32>
    %c0_62 = arith.constant 0 : index
    %c158_63 = arith.constant 158 : index
    %160 = vector.load %arg5[%c0_62, %c158_63] : memref<2x512xf32, #tpu.memory_space<vmem>>, vector<2x256xf32>
    %c36 = arith.constant 36 : index
    %161 = memref.load %arg2[%c36] : memref<98xf32, #tpu.memory_space<smem>>
    %162 = vector.broadcast %161 : f32 to vector<2x256xf32>
    %163 = arith.mulf %162, %159 : vector<2x256xf32>
    %c85 = arith.constant 85 : index
    %164 = memref.load %arg2[%c85] : memref<98xf32, #tpu.memory_space<smem>>
    %165 = vector.broadcast %164 : f32 to vector<2x256xf32>
    %166 = arith.mulf %165, %160 : vector<2x256xf32>
    %167 = arith.addf %157, %163 : vector<2x256xf32>
    %168 = arith.addf %158, %166 : vector<2x256xf32>
    %c0_64 = arith.constant 0 : index
    %c174 = arith.constant 174 : index
    %169 = vector.load %arg4[%c0_64, %c174] : memref<2x512xf32, #tpu.memory_space<vmem>>, vector<2x256xf32>
    %c0_65 = arith.constant 0 : index
    %c174_66 = arith.constant 174 : index
    %170 = vector.load %arg5[%c0_65, %c174_66] : memref<2x512xf32, #tpu.memory_space<vmem>>, vector<2x256xf32>
    %c43 = arith.constant 43 : index
    %171 = memref.load %arg2[%c43] : memref<98xf32, #tpu.memory_space<smem>>
    %172 = vector.broadcast %171 : f32 to vector<2x256xf32>
    %173 = arith.mulf %172, %169 : vector<2x256xf32>
    %c92 = arith.constant 92 : index
    %174 = memref.load %arg2[%c92] : memref<98xf32, #tpu.memory_space<smem>>
    %175 = vector.broadcast %174 : f32 to vector<2x256xf32>
    %176 = arith.mulf %175, %170 : vector<2x256xf32>
    %177 = arith.addf %167, %173 : vector<2x256xf32>
    %178 = arith.addf %168, %176 : vector<2x256xf32>
    %179 = arith.addf %177, %178 : vector<2x256xf32>
    %c-2_i32 = arith.constant -2 : i32
    %180 = vector.broadcast %c-2_i32 : i32 to vector<1x256xi32>
    %181 = arith.addi %28, %180 : vector<1x256xi32>
    %c0_i32_67 = arith.constant 0 : i32
    %182 = vector.broadcast %c0_i32_67 : i32 to vector<1x256xi32>
    %183 = arith.cmpi sge, %181, %182 : vector<1x256xi32>
    %c-2_i32_68 = arith.constant -2 : i32
    %184 = vector.broadcast %c-2_i32_68 : i32 to vector<1x256xi32>
    %185 = arith.addi %28, %184 : vector<1x256xi32>
    %c16_i32_69 = arith.constant 16 : i32
    %186 = vector.broadcast %c16_i32_69 : i32 to vector<1x256xi32>
    %187 = arith.cmpi slt, %185, %186 : vector<1x256xi32>
    %188 = arith.andi %183, %187 : vector<1x256xi1>
    %cst_70 = arith.constant 0.000000e+00 : f32
    %189 = vector.shape_cast %188 : vector<1x256xi1> to vector<1x256xi1>
    %190 = vector.broadcast %189 : vector<1x256xi1> to vector<2x256xi1>
    %191 = vector.broadcast %cst_70 : f32 to vector<2x256xf32>
    %192 = arith.select %190, %179, %191 : vector<2x256xi1>, vector<2x256xf32>
    %c0_71 = arith.constant 0 : index
    %c79 = arith.constant 79 : index
    %193 = vector.load %arg4[%c0_71, %c79] : memref<2x512xf32, #tpu.memory_space<vmem>>, vector<2x256xf32>
    %c0_72 = arith.constant 0 : index
    %c79_73 = arith.constant 79 : index
    %194 = vector.load %arg5[%c0_72, %c79_73] : memref<2x512xf32, #tpu.memory_space<vmem>>, vector<2x256xf32>
    %c2 = arith.constant 2 : index
    %195 = memref.load %arg2[%c2] : memref<98xf32, #tpu.memory_space<smem>>
    %196 = vector.broadcast %195 : f32 to vector<2x256xf32>
    %197 = arith.mulf %196, %193 : vector<2x256xf32>
    %c51 = arith.constant 51 : index
    %198 = memref.load %arg2[%c51] : memref<98xf32, #tpu.memory_space<smem>>
    %199 = vector.broadcast %198 : f32 to vector<2x256xf32>
    %200 = arith.mulf %199, %194 : vector<2x256xf32>
    %c0_74 = arith.constant 0 : index
    %c95 = arith.constant 95 : index
    %201 = vector.load %arg4[%c0_74, %c95] : memref<2x512xf32, #tpu.memory_space<vmem>>, vector<2x256xf32>
    %c0_75 = arith.constant 0 : index
    %c95_76 = arith.constant 95 : index
    %202 = vector.load %arg5[%c0_75, %c95_76] : memref<2x512xf32, #tpu.memory_space<vmem>>, vector<2x256xf32>
    %c9 = arith.constant 9 : index
    %203 = memref.load %arg2[%c9] : memref<98xf32, #tpu.memory_space<smem>>
    %204 = vector.broadcast %203 : f32 to vector<2x256xf32>
    %205 = arith.mulf %204, %201 : vector<2x256xf32>
    %c58 = arith.constant 58 : index
    %206 = memref.load %arg2[%c58] : memref<98xf32, #tpu.memory_space<smem>>
    %207 = vector.broadcast %206 : f32 to vector<2x256xf32>
    %208 = arith.mulf %207, %202 : vector<2x256xf32>
    %209 = arith.addf %197, %205 : vector<2x256xf32>
    %210 = arith.addf %200, %208 : vector<2x256xf32>
    %c0_77 = arith.constant 0 : index
    %c111 = arith.constant 111 : index
    %211 = vector.load %arg4[%c0_77, %c111] : memref<2x512xf32, #tpu.memory_space<vmem>>, vector<2x256xf32>
    %c0_78 = arith.constant 0 : index
    %c111_79 = arith.constant 111 : index
    %212 = vector.load %arg5[%c0_78, %c111_79] : memref<2x512xf32, #tpu.memory_space<vmem>>, vector<2x256xf32>
    %c16 = arith.constant 16 : index
    %213 = memref.load %arg2[%c16] : memref<98xf32, #tpu.memory_space<smem>>
    %214 = vector.broadcast %213 : f32 to vector<2x256xf32>
    %215 = arith.mulf %214, %211 : vector<2x256xf32>
    %c65 = arith.constant 65 : index
    %216 = memref.load %arg2[%c65] : memref<98xf32, #tpu.memory_space<smem>>
    %217 = vector.broadcast %216 : f32 to vector<2x256xf32>
    %218 = arith.mulf %217, %212 : vector<2x256xf32>
    %219 = arith.addf %209, %215 : vector<2x256xf32>
    %220 = arith.addf %210, %218 : vector<2x256xf32>
    %c0_80 = arith.constant 0 : index
    %c127 = arith.constant 127 : index
    %221 = vector.load %arg4[%c0_80, %c127] : memref<2x512xf32, #tpu.memory_space<vmem>>, vector<2x256xf32>
    %c0_81 = arith.constant 0 : index
    %c127_82 = arith.constant 127 : index
    %222 = vector.load %arg5[%c0_81, %c127_82] : memref<2x512xf32, #tpu.memory_space<vmem>>, vector<2x256xf32>
    %c23 = arith.constant 23 : index
    %223 = memref.load %arg2[%c23] : memref<98xf32, #tpu.memory_space<smem>>
    %224 = vector.broadcast %223 : f32 to vector<2x256xf32>
    %225 = arith.mulf %224, %221 : vector<2x256xf32>
    %c72 = arith.constant 72 : index
    %226 = memref.load %arg2[%c72] : memref<98xf32, #tpu.memory_space<smem>>
    %227 = vector.broadcast %226 : f32 to vector<2x256xf32>
    %228 = arith.mulf %227, %222 : vector<2x256xf32>
    %229 = arith.addf %219, %225 : vector<2x256xf32>
    %230 = arith.addf %220, %228 : vector<2x256xf32>
    %c0_83 = arith.constant 0 : index
    %c143 = arith.constant 143 : index
    %231 = vector.load %arg4[%c0_83, %c143] : memref<2x512xf32, #tpu.memory_space<vmem>>, vector<2x256xf32>
    %c0_84 = arith.constant 0 : index
    %c143_85 = arith.constant 143 : index
    %232 = vector.load %arg5[%c0_84, %c143_85] : memref<2x512xf32, #tpu.memory_space<vmem>>, vector<2x256xf32>
    %c30 = arith.constant 30 : index
    %233 = memref.load %arg2[%c30] : memref<98xf32, #tpu.memory_space<smem>>
    %234 = vector.broadcast %233 : f32 to vector<2x256xf32>
    %235 = arith.mulf %234, %231 : vector<2x256xf32>
    %c79_86 = arith.constant 79 : index
    %236 = memref.load %arg2[%c79_86] : memref<98xf32, #tpu.memory_space<smem>>
    %237 = vector.broadcast %236 : f32 to vector<2x256xf32>
    %238 = arith.mulf %237, %232 : vector<2x256xf32>
    %239 = arith.addf %229, %235 : vector<2x256xf32>
    %240 = arith.addf %230, %238 : vector<2x256xf32>
    %c0_87 = arith.constant 0 : index
    %c159 = arith.constant 159 : index
    %241 = vector.load %arg4[%c0_87, %c159] : memref<2x512xf32, #tpu.memory_space<vmem>>, vector<2x256xf32>
    %c0_88 = arith.constant 0 : index
    %c159_89 = arith.constant 159 : index
    %242 = vector.load %arg5[%c0_88, %c159_89] : memref<2x512xf32, #tpu.memory_space<vmem>>, vector<2x256xf32>
    %c37 = arith.constant 37 : index
    %243 = memref.load %arg2[%c37] : memref<98xf32, #tpu.memory_space<smem>>
    %244 = vector.broadcast %243 : f32 to vector<2x256xf32>
    %245 = arith.mulf %244, %241 : vector<2x256xf32>
    %c86 = arith.constant 86 : index
    %246 = memref.load %arg2[%c86] : memref<98xf32, #tpu.memory_space<smem>>
    %247 = vector.broadcast %246 : f32 to vector<2x256xf32>
    %248 = arith.mulf %247, %242 : vector<2x256xf32>
    %249 = arith.addf %239, %245 : vector<2x256xf32>
    %250 = arith.addf %240, %248 : vector<2x256xf32>
    %c0_90 = arith.constant 0 : index
    %c175 = arith.constant 175 : index
    %251 = vector.load %arg4[%c0_90, %c175] : memref<2x512xf32, #tpu.memory_space<vmem>>, vector<2x256xf32>
    %c0_91 = arith.constant 0 : index
    %c175_92 = arith.constant 175 : index
    %252 = vector.load %arg5[%c0_91, %c175_92] : memref<2x512xf32, #tpu.memory_space<vmem>>, vector<2x256xf32>
    %c44 = arith.constant 44 : index
    %253 = memref.load %arg2[%c44] : memref<98xf32, #tpu.memory_space<smem>>
    %254 = vector.broadcast %253 : f32 to vector<2x256xf32>
    %255 = arith.mulf %254, %251 : vector<2x256xf32>
    %c93_93 = arith.constant 93 : index
    %256 = memref.load %arg2[%c93_93] : memref<98xf32, #tpu.memory_space<smem>>
    %257 = vector.broadcast %256 : f32 to vector<2x256xf32>
    %258 = arith.mulf %257, %252 : vector<2x256xf32>
    %259 = arith.addf %249, %255 : vector<2x256xf32>
    %260 = arith.addf %250, %258 : vector<2x256xf32>
    %261 = arith.addf %259, %260 : vector<2x256xf32>
    %c-1_i32 = arith.constant -1 : i32
    %262 = vector.broadcast %c-1_i32 : i32 to vector<1x256xi32>
    %263 = arith.addi %28, %262 : vector<1x256xi32>
    %c0_i32_94 = arith.constant 0 : i32
    %264 = vector.broadcast %c0_i32_94 : i32 to vector<1x256xi32>
    %265 = arith.cmpi sge, %263, %264 : vector<1x256xi32>
    %c-1_i32_95 = arith.constant -1 : i32
    %266 = vector.broadcast %c-1_i32_95 : i32 to vector<1x256xi32>
    %267 = arith.addi %28, %266 : vector<1x256xi32>
    %c16_i32_96 = arith.constant 16 : i32
    %268 = vector.broadcast %c16_i32_96 : i32 to vector<1x256xi32>
    %269 = arith.cmpi slt, %267, %268 : vector<1x256xi32>
    %270 = arith.andi %265, %269 : vector<1x256xi1>
    %cst_97 = arith.constant 0.000000e+00 : f32
    %271 = vector.shape_cast %270 : vector<1x256xi1> to vector<1x256xi1>
    %272 = vector.broadcast %271 : vector<1x256xi1> to vector<2x256xi1>
    %273 = vector.broadcast %cst_97 : f32 to vector<2x256xf32>
    %274 = arith.select %272, %261, %273 : vector<2x256xi1>, vector<2x256xf32>
    %c0_98 = arith.constant 0 : index
    %c80 = arith.constant 80 : index
    %275 = vector.load %arg4[%c0_98, %c80] : memref<2x512xf32, #tpu.memory_space<vmem>>, vector<2x256xf32>
    %c0_99 = arith.constant 0 : index
    %c80_100 = arith.constant 80 : index
    %276 = vector.load %arg5[%c0_99, %c80_100] : memref<2x512xf32, #tpu.memory_space<vmem>>, vector<2x256xf32>
    %c3 = arith.constant 3 : index
    %277 = memref.load %arg2[%c3] : memref<98xf32, #tpu.memory_space<smem>>
    %278 = vector.broadcast %277 : f32 to vector<2x256xf32>
    %279 = arith.mulf %278, %275 : vector<2x256xf32>
    %c52 = arith.constant 52 : index
    %280 = memref.load %arg2[%c52] : memref<98xf32, #tpu.memory_space<smem>>
    %281 = vector.broadcast %280 : f32 to vector<2x256xf32>
    %282 = arith.mulf %281, %276 : vector<2x256xf32>
    %c0_101 = arith.constant 0 : index
    %c96 = arith.constant 96 : index
    %283 = vector.load %arg4[%c0_101, %c96] : memref<2x512xf32, #tpu.memory_space<vmem>>, vector<2x256xf32>
    %c0_102 = arith.constant 0 : index
    %c96_103 = arith.constant 96 : index
    %284 = vector.load %arg5[%c0_102, %c96_103] : memref<2x512xf32, #tpu.memory_space<vmem>>, vector<2x256xf32>
    %c10 = arith.constant 10 : index
    %285 = memref.load %arg2[%c10] : memref<98xf32, #tpu.memory_space<smem>>
    %286 = vector.broadcast %285 : f32 to vector<2x256xf32>
    %287 = arith.mulf %286, %283 : vector<2x256xf32>
    %c59 = arith.constant 59 : index
    %288 = memref.load %arg2[%c59] : memref<98xf32, #tpu.memory_space<smem>>
    %289 = vector.broadcast %288 : f32 to vector<2x256xf32>
    %290 = arith.mulf %289, %284 : vector<2x256xf32>
    %291 = arith.addf %279, %287 : vector<2x256xf32>
    %292 = arith.addf %282, %290 : vector<2x256xf32>
    %c0_104 = arith.constant 0 : index
    %c112 = arith.constant 112 : index
    %293 = vector.load %arg4[%c0_104, %c112] : memref<2x512xf32, #tpu.memory_space<vmem>>, vector<2x256xf32>
    %c0_105 = arith.constant 0 : index
    %c112_106 = arith.constant 112 : index
    %294 = vector.load %arg5[%c0_105, %c112_106] : memref<2x512xf32, #tpu.memory_space<vmem>>, vector<2x256xf32>
    %c17 = arith.constant 17 : index
    %295 = memref.load %arg2[%c17] : memref<98xf32, #tpu.memory_space<smem>>
    %296 = vector.broadcast %295 : f32 to vector<2x256xf32>
    %297 = arith.mulf %296, %293 : vector<2x256xf32>
    %c66 = arith.constant 66 : index
    %298 = memref.load %arg2[%c66] : memref<98xf32, #tpu.memory_space<smem>>
    %299 = vector.broadcast %298 : f32 to vector<2x256xf32>
    %300 = arith.mulf %299, %294 : vector<2x256xf32>
    %301 = arith.addf %291, %297 : vector<2x256xf32>
    %302 = arith.addf %292, %300 : vector<2x256xf32>
    %c0_107 = arith.constant 0 : index
    %c128_108 = arith.constant 128 : index
    %303 = vector.load %arg4[%c0_107, %c128_108] : memref<2x512xf32, #tpu.memory_space<vmem>>, vector<2x256xf32>
    %c0_109 = arith.constant 0 : index
    %c128_110 = arith.constant 128 : index
    %304 = vector.load %arg5[%c0_109, %c128_110] : memref<2x512xf32, #tpu.memory_space<vmem>>, vector<2x256xf32>
    %c24 = arith.constant 24 : index
    %305 = memref.load %arg2[%c24] : memref<98xf32, #tpu.memory_space<smem>>
    %306 = vector.broadcast %305 : f32 to vector<2x256xf32>
    %307 = arith.mulf %306, %303 : vector<2x256xf32>
    %c73 = arith.constant 73 : index
    %308 = memref.load %arg2[%c73] : memref<98xf32, #tpu.memory_space<smem>>
    %309 = vector.broadcast %308 : f32 to vector<2x256xf32>
    %310 = arith.mulf %309, %304 : vector<2x256xf32>
    %311 = arith.addf %301, %307 : vector<2x256xf32>
    %312 = arith.addf %302, %310 : vector<2x256xf32>
    %c0_111 = arith.constant 0 : index
    %c144 = arith.constant 144 : index
    %313 = vector.load %arg4[%c0_111, %c144] : memref<2x512xf32, #tpu.memory_space<vmem>>, vector<2x256xf32>
    %c0_112 = arith.constant 0 : index
    %c144_113 = arith.constant 144 : index
    %314 = vector.load %arg5[%c0_112, %c144_113] : memref<2x512xf32, #tpu.memory_space<vmem>>, vector<2x256xf32>
    %c31 = arith.constant 31 : index
    %315 = memref.load %arg2[%c31] : memref<98xf32, #tpu.memory_space<smem>>
    %316 = vector.broadcast %315 : f32 to vector<2x256xf32>
    %317 = arith.mulf %316, %313 : vector<2x256xf32>
    %c80_114 = arith.constant 80 : index
    %318 = memref.load %arg2[%c80_114] : memref<98xf32, #tpu.memory_space<smem>>
    %319 = vector.broadcast %318 : f32 to vector<2x256xf32>
    %320 = arith.mulf %319, %314 : vector<2x256xf32>
    %321 = arith.addf %311, %317 : vector<2x256xf32>
    %322 = arith.addf %312, %320 : vector<2x256xf32>
    %c0_115 = arith.constant 0 : index
    %c160 = arith.constant 160 : index
    %323 = vector.load %arg4[%c0_115, %c160] : memref<2x512xf32, #tpu.memory_space<vmem>>, vector<2x256xf32>
    %c0_116 = arith.constant 0 : index
    %c160_117 = arith.constant 160 : index
    %324 = vector.load %arg5[%c0_116, %c160_117] : memref<2x512xf32, #tpu.memory_space<vmem>>, vector<2x256xf32>
    %c38 = arith.constant 38 : index
    %325 = memref.load %arg2[%c38] : memref<98xf32, #tpu.memory_space<smem>>
    %326 = vector.broadcast %325 : f32 to vector<2x256xf32>
    %327 = arith.mulf %326, %323 : vector<2x256xf32>
    %c87 = arith.constant 87 : index
    %328 = memref.load %arg2[%c87] : memref<98xf32, #tpu.memory_space<smem>>
    %329 = vector.broadcast %328 : f32 to vector<2x256xf32>
    %330 = arith.mulf %329, %324 : vector<2x256xf32>
    %331 = arith.addf %321, %327 : vector<2x256xf32>
    %332 = arith.addf %322, %330 : vector<2x256xf32>
    %c0_118 = arith.constant 0 : index
    %c176 = arith.constant 176 : index
    %333 = vector.load %arg4[%c0_118, %c176] : memref<2x512xf32, #tpu.memory_space<vmem>>, vector<2x256xf32>
    %c0_119 = arith.constant 0 : index
    %c176_120 = arith.constant 176 : index
    %334 = vector.load %arg5[%c0_119, %c176_120] : memref<2x512xf32, #tpu.memory_space<vmem>>, vector<2x256xf32>
    %c45 = arith.constant 45 : index
    %335 = memref.load %arg2[%c45] : memref<98xf32, #tpu.memory_space<smem>>
    %336 = vector.broadcast %335 : f32 to vector<2x256xf32>
    %337 = arith.mulf %336, %333 : vector<2x256xf32>
    %c94_121 = arith.constant 94 : index
    %338 = memref.load %arg2[%c94_121] : memref<98xf32, #tpu.memory_space<smem>>
    %339 = vector.broadcast %338 : f32 to vector<2x256xf32>
    %340 = arith.mulf %339, %334 : vector<2x256xf32>
    %341 = arith.addf %331, %337 : vector<2x256xf32>
    %342 = arith.addf %332, %340 : vector<2x256xf32>
    %343 = arith.addf %341, %342 : vector<2x256xf32>
    %c0_122 = arith.constant 0 : index
    %c81 = arith.constant 81 : index
    %344 = vector.load %arg4[%c0_122, %c81] : memref<2x512xf32, #tpu.memory_space<vmem>>, vector<2x256xf32>
    %c0_123 = arith.constant 0 : index
    %c81_124 = arith.constant 81 : index
    %345 = vector.load %arg5[%c0_123, %c81_124] : memref<2x512xf32, #tpu.memory_space<vmem>>, vector<2x256xf32>
    %c4 = arith.constant 4 : index
    %346 = memref.load %arg2[%c4] : memref<98xf32, #tpu.memory_space<smem>>
    %347 = vector.broadcast %346 : f32 to vector<2x256xf32>
    %348 = arith.mulf %347, %344 : vector<2x256xf32>
    %c53 = arith.constant 53 : index
    %349 = memref.load %arg2[%c53] : memref<98xf32, #tpu.memory_space<smem>>
    %350 = vector.broadcast %349 : f32 to vector<2x256xf32>
    %351 = arith.mulf %350, %345 : vector<2x256xf32>
    %c0_125 = arith.constant 0 : index
    %c97 = arith.constant 97 : index
    %352 = vector.load %arg4[%c0_125, %c97] : memref<2x512xf32, #tpu.memory_space<vmem>>, vector<2x256xf32>
    %c0_126 = arith.constant 0 : index
    %c97_127 = arith.constant 97 : index
    %353 = vector.load %arg5[%c0_126, %c97_127] : memref<2x512xf32, #tpu.memory_space<vmem>>, vector<2x256xf32>
    %c11 = arith.constant 11 : index
    %354 = memref.load %arg2[%c11] : memref<98xf32, #tpu.memory_space<smem>>
    %355 = vector.broadcast %354 : f32 to vector<2x256xf32>
    %356 = arith.mulf %355, %352 : vector<2x256xf32>
    %c60 = arith.constant 60 : index
    %357 = memref.load %arg2[%c60] : memref<98xf32, #tpu.memory_space<smem>>
    %358 = vector.broadcast %357 : f32 to vector<2x256xf32>
    %359 = arith.mulf %358, %353 : vector<2x256xf32>
    %360 = arith.addf %348, %356 : vector<2x256xf32>
    %361 = arith.addf %351, %359 : vector<2x256xf32>
    %c0_128 = arith.constant 0 : index
    %c113 = arith.constant 113 : index
    %362 = vector.load %arg4[%c0_128, %c113] : memref<2x512xf32, #tpu.memory_space<vmem>>, vector<2x256xf32>
    %c0_129 = arith.constant 0 : index
    %c113_130 = arith.constant 113 : index
    %363 = vector.load %arg5[%c0_129, %c113_130] : memref<2x512xf32, #tpu.memory_space<vmem>>, vector<2x256xf32>
    %c18 = arith.constant 18 : index
    %364 = memref.load %arg2[%c18] : memref<98xf32, #tpu.memory_space<smem>>
    %365 = vector.broadcast %364 : f32 to vector<2x256xf32>
    %366 = arith.mulf %365, %362 : vector<2x256xf32>
    %c67 = arith.constant 67 : index
    %367 = memref.load %arg2[%c67] : memref<98xf32, #tpu.memory_space<smem>>
    %368 = vector.broadcast %367 : f32 to vector<2x256xf32>
    %369 = arith.mulf %368, %363 : vector<2x256xf32>
    %370 = arith.addf %360, %366 : vector<2x256xf32>
    %371 = arith.addf %361, %369 : vector<2x256xf32>
    %c0_131 = arith.constant 0 : index
    %c129 = arith.constant 129 : index
    %372 = vector.load %arg4[%c0_131, %c129] : memref<2x512xf32, #tpu.memory_space<vmem>>, vector<2x256xf32>
    %c0_132 = arith.constant 0 : index
    %c129_133 = arith.constant 129 : index
    %373 = vector.load %arg5[%c0_132, %c129_133] : memref<2x512xf32, #tpu.memory_space<vmem>>, vector<2x256xf32>
    %c25 = arith.constant 25 : index
    %374 = memref.load %arg2[%c25] : memref<98xf32, #tpu.memory_space<smem>>
    %375 = vector.broadcast %374 : f32 to vector<2x256xf32>
    %376 = arith.mulf %375, %372 : vector<2x256xf32>
    %c74 = arith.constant 74 : index
    %377 = memref.load %arg2[%c74] : memref<98xf32, #tpu.memory_space<smem>>
    %378 = vector.broadcast %377 : f32 to vector<2x256xf32>
    %379 = arith.mulf %378, %373 : vector<2x256xf32>
    %380 = arith.addf %370, %376 : vector<2x256xf32>
    %381 = arith.addf %371, %379 : vector<2x256xf32>
    %c0_134 = arith.constant 0 : index
    %c145 = arith.constant 145 : index
    %382 = vector.load %arg4[%c0_134, %c145] : memref<2x512xf32, #tpu.memory_space<vmem>>, vector<2x256xf32>
    %c0_135 = arith.constant 0 : index
    %c145_136 = arith.constant 145 : index
    %383 = vector.load %arg5[%c0_135, %c145_136] : memref<2x512xf32, #tpu.memory_space<vmem>>, vector<2x256xf32>
    %c32 = arith.constant 32 : index
    %384 = memref.load %arg2[%c32] : memref<98xf32, #tpu.memory_space<smem>>
    %385 = vector.broadcast %384 : f32 to vector<2x256xf32>
    %386 = arith.mulf %385, %382 : vector<2x256xf32>
    %c81_137 = arith.constant 81 : index
    %387 = memref.load %arg2[%c81_137] : memref<98xf32, #tpu.memory_space<smem>>
    %388 = vector.broadcast %387 : f32 to vector<2x256xf32>
    %389 = arith.mulf %388, %383 : vector<2x256xf32>
    %390 = arith.addf %380, %386 : vector<2x256xf32>
    %391 = arith.addf %381, %389 : vector<2x256xf32>
    %c0_138 = arith.constant 0 : index
    %c161 = arith.constant 161 : index
    %392 = vector.load %arg4[%c0_138, %c161] : memref<2x512xf32, #tpu.memory_space<vmem>>, vector<2x256xf32>
    %c0_139 = arith.constant 0 : index
    %c161_140 = arith.constant 161 : index
    %393 = vector.load %arg5[%c0_139, %c161_140] : memref<2x512xf32, #tpu.memory_space<vmem>>, vector<2x256xf32>
    %c39 = arith.constant 39 : index
    %394 = memref.load %arg2[%c39] : memref<98xf32, #tpu.memory_space<smem>>
    %395 = vector.broadcast %394 : f32 to vector<2x256xf32>
    %396 = arith.mulf %395, %392 : vector<2x256xf32>
    %c88 = arith.constant 88 : index
    %397 = memref.load %arg2[%c88] : memref<98xf32, #tpu.memory_space<smem>>
    %398 = vector.broadcast %397 : f32 to vector<2x256xf32>
    %399 = arith.mulf %398, %393 : vector<2x256xf32>
    %400 = arith.addf %390, %396 : vector<2x256xf32>
    %401 = arith.addf %391, %399 : vector<2x256xf32>
    %c0_141 = arith.constant 0 : index
    %c177 = arith.constant 177 : index
    %402 = vector.load %arg4[%c0_141, %c177] : memref<2x512xf32, #tpu.memory_space<vmem>>, vector<2x256xf32>
    %c0_142 = arith.constant 0 : index
    %c177_143 = arith.constant 177 : index
    %403 = vector.load %arg5[%c0_142, %c177_143] : memref<2x512xf32, #tpu.memory_space<vmem>>, vector<2x256xf32>
    %c46 = arith.constant 46 : index
    %404 = memref.load %arg2[%c46] : memref<98xf32, #tpu.memory_space<smem>>
    %405 = vector.broadcast %404 : f32 to vector<2x256xf32>
    %406 = arith.mulf %405, %402 : vector<2x256xf32>
    %c95_144 = arith.constant 95 : index
    %407 = memref.load %arg2[%c95_144] : memref<98xf32, #tpu.memory_space<smem>>
    %408 = vector.broadcast %407 : f32 to vector<2x256xf32>
    %409 = arith.mulf %408, %403 : vector<2x256xf32>
    %410 = arith.addf %400, %406 : vector<2x256xf32>
    %411 = arith.addf %401, %409 : vector<2x256xf32>
    %412 = arith.addf %410, %411 : vector<2x256xf32>
    %c1_i32_145 = arith.constant 1 : i32
    %413 = vector.broadcast %c1_i32_145 : i32 to vector<1x256xi32>
    %414 = arith.addi %28, %413 : vector<1x256xi32>
    %c0_i32_146 = arith.constant 0 : i32
    %415 = vector.broadcast %c0_i32_146 : i32 to vector<1x256xi32>
    %416 = arith.cmpi sge, %414, %415 : vector<1x256xi32>
    %c1_i32_147 = arith.constant 1 : i32
    %417 = vector.broadcast %c1_i32_147 : i32 to vector<1x256xi32>
    %418 = arith.addi %28, %417 : vector<1x256xi32>
    %c16_i32_148 = arith.constant 16 : i32
    %419 = vector.broadcast %c16_i32_148 : i32 to vector<1x256xi32>
    %420 = arith.cmpi slt, %418, %419 : vector<1x256xi32>
    %421 = arith.andi %416, %420 : vector<1x256xi1>
    %cst_149 = arith.constant 0.000000e+00 : f32
    %422 = vector.shape_cast %421 : vector<1x256xi1> to vector<1x256xi1>
    %423 = vector.broadcast %422 : vector<1x256xi1> to vector<2x256xi1>
    %424 = vector.broadcast %cst_149 : f32 to vector<2x256xf32>
    %425 = arith.select %423, %412, %424 : vector<2x256xi1>, vector<2x256xf32>
    %c0_150 = arith.constant 0 : index
    %c82 = arith.constant 82 : index
    %426 = vector.load %arg4[%c0_150, %c82] : memref<2x512xf32, #tpu.memory_space<vmem>>, vector<2x256xf32>
    %c0_151 = arith.constant 0 : index
    %c82_152 = arith.constant 82 : index
    %427 = vector.load %arg5[%c0_151, %c82_152] : memref<2x512xf32, #tpu.memory_space<vmem>>, vector<2x256xf32>
    %c5 = arith.constant 5 : index
    %428 = memref.load %arg2[%c5] : memref<98xf32, #tpu.memory_space<smem>>
    %429 = vector.broadcast %428 : f32 to vector<2x256xf32>
    %430 = arith.mulf %429, %426 : vector<2x256xf32>
    %c54 = arith.constant 54 : index
    %431 = memref.load %arg2[%c54] : memref<98xf32, #tpu.memory_space<smem>>
    %432 = vector.broadcast %431 : f32 to vector<2x256xf32>
    %433 = arith.mulf %432, %427 : vector<2x256xf32>
    %c0_153 = arith.constant 0 : index
    %c98 = arith.constant 98 : index
    %434 = vector.load %arg4[%c0_153, %c98] : memref<2x512xf32, #tpu.memory_space<vmem>>, vector<2x256xf32>
    %c0_154 = arith.constant 0 : index
    %c98_155 = arith.constant 98 : index
    %435 = vector.load %arg5[%c0_154, %c98_155] : memref<2x512xf32, #tpu.memory_space<vmem>>, vector<2x256xf32>
    %c12 = arith.constant 12 : index
    %436 = memref.load %arg2[%c12] : memref<98xf32, #tpu.memory_space<smem>>
    %437 = vector.broadcast %436 : f32 to vector<2x256xf32>
    %438 = arith.mulf %437, %434 : vector<2x256xf32>
    %c61 = arith.constant 61 : index
    %439 = memref.load %arg2[%c61] : memref<98xf32, #tpu.memory_space<smem>>
    %440 = vector.broadcast %439 : f32 to vector<2x256xf32>
    %441 = arith.mulf %440, %435 : vector<2x256xf32>
    %442 = arith.addf %430, %438 : vector<2x256xf32>
    %443 = arith.addf %433, %441 : vector<2x256xf32>
    %c0_156 = arith.constant 0 : index
    %c114 = arith.constant 114 : index
    %444 = vector.load %arg4[%c0_156, %c114] : memref<2x512xf32, #tpu.memory_space<vmem>>, vector<2x256xf32>
    %c0_157 = arith.constant 0 : index
    %c114_158 = arith.constant 114 : index
    %445 = vector.load %arg5[%c0_157, %c114_158] : memref<2x512xf32, #tpu.memory_space<vmem>>, vector<2x256xf32>
    %c19 = arith.constant 19 : index
    %446 = memref.load %arg2[%c19] : memref<98xf32, #tpu.memory_space<smem>>
    %447 = vector.broadcast %446 : f32 to vector<2x256xf32>
    %448 = arith.mulf %447, %444 : vector<2x256xf32>
    %c68 = arith.constant 68 : index
    %449 = memref.load %arg2[%c68] : memref<98xf32, #tpu.memory_space<smem>>
    %450 = vector.broadcast %449 : f32 to vector<2x256xf32>
    %451 = arith.mulf %450, %445 : vector<2x256xf32>
    %452 = arith.addf %442, %448 : vector<2x256xf32>
    %453 = arith.addf %443, %451 : vector<2x256xf32>
    %c0_159 = arith.constant 0 : index
    %c130 = arith.constant 130 : index
    %454 = vector.load %arg4[%c0_159, %c130] : memref<2x512xf32, #tpu.memory_space<vmem>>, vector<2x256xf32>
    %c0_160 = arith.constant 0 : index
    %c130_161 = arith.constant 130 : index
    %455 = vector.load %arg5[%c0_160, %c130_161] : memref<2x512xf32, #tpu.memory_space<vmem>>, vector<2x256xf32>
    %c26 = arith.constant 26 : index
    %456 = memref.load %arg2[%c26] : memref<98xf32, #tpu.memory_space<smem>>
    %457 = vector.broadcast %456 : f32 to vector<2x256xf32>
    %458 = arith.mulf %457, %454 : vector<2x256xf32>
    %c75 = arith.constant 75 : index
    %459 = memref.load %arg2[%c75] : memref<98xf32, #tpu.memory_space<smem>>
    %460 = vector.broadcast %459 : f32 to vector<2x256xf32>
    %461 = arith.mulf %460, %455 : vector<2x256xf32>
    %462 = arith.addf %452, %458 : vector<2x256xf32>
    %463 = arith.addf %453, %461 : vector<2x256xf32>
    %c0_162 = arith.constant 0 : index
    %c146 = arith.constant 146 : index
    %464 = vector.load %arg4[%c0_162, %c146] : memref<2x512xf32, #tpu.memory_space<vmem>>, vector<2x256xf32>
    %c0_163 = arith.constant 0 : index
    %c146_164 = arith.constant 146 : index
    %465 = vector.load %arg5[%c0_163, %c146_164] : memref<2x512xf32, #tpu.memory_space<vmem>>, vector<2x256xf32>
    %c33 = arith.constant 33 : index
    %466 = memref.load %arg2[%c33] : memref<98xf32, #tpu.memory_space<smem>>
    %467 = vector.broadcast %466 : f32 to vector<2x256xf32>
    %468 = arith.mulf %467, %464 : vector<2x256xf32>
    %c82_165 = arith.constant 82 : index
    %469 = memref.load %arg2[%c82_165] : memref<98xf32, #tpu.memory_space<smem>>
    %470 = vector.broadcast %469 : f32 to vector<2x256xf32>
    %471 = arith.mulf %470, %465 : vector<2x256xf32>
    %472 = arith.addf %462, %468 : vector<2x256xf32>
    %473 = arith.addf %463, %471 : vector<2x256xf32>
    %c0_166 = arith.constant 0 : index
    %c162 = arith.constant 162 : index
    %474 = vector.load %arg4[%c0_166, %c162] : memref<2x512xf32, #tpu.memory_space<vmem>>, vector<2x256xf32>
    %c0_167 = arith.constant 0 : index
    %c162_168 = arith.constant 162 : index
    %475 = vector.load %arg5[%c0_167, %c162_168] : memref<2x512xf32, #tpu.memory_space<vmem>>, vector<2x256xf32>
    %c40 = arith.constant 40 : index
    %476 = memref.load %arg2[%c40] : memref<98xf32, #tpu.memory_space<smem>>
    %477 = vector.broadcast %476 : f32 to vector<2x256xf32>
    %478 = arith.mulf %477, %474 : vector<2x256xf32>
    %c89 = arith.constant 89 : index
    %479 = memref.load %arg2[%c89] : memref<98xf32, #tpu.memory_space<smem>>
    %480 = vector.broadcast %479 : f32 to vector<2x256xf32>
    %481 = arith.mulf %480, %475 : vector<2x256xf32>
    %482 = arith.addf %472, %478 : vector<2x256xf32>
    %483 = arith.addf %473, %481 : vector<2x256xf32>
    %c0_169 = arith.constant 0 : index
    %c178 = arith.constant 178 : index
    %484 = vector.load %arg4[%c0_169, %c178] : memref<2x512xf32, #tpu.memory_space<vmem>>, vector<2x256xf32>
    %c0_170 = arith.constant 0 : index
    %c178_171 = arith.constant 178 : index
    %485 = vector.load %arg5[%c0_170, %c178_171] : memref<2x512xf32, #tpu.memory_space<vmem>>, vector<2x256xf32>
    %c47 = arith.constant 47 : index
    %486 = memref.load %arg2[%c47] : memref<98xf32, #tpu.memory_space<smem>>
    %487 = vector.broadcast %486 : f32 to vector<2x256xf32>
    %488 = arith.mulf %487, %484 : vector<2x256xf32>
    %c96_172 = arith.constant 96 : index
    %489 = memref.load %arg2[%c96_172] : memref<98xf32, #tpu.memory_space<smem>>
    %490 = vector.broadcast %489 : f32 to vector<2x256xf32>
    %491 = arith.mulf %490, %485 : vector<2x256xf32>
    %492 = arith.addf %482, %488 : vector<2x256xf32>
    %493 = arith.addf %483, %491 : vector<2x256xf32>
    %494 = arith.addf %492, %493 : vector<2x256xf32>
    %c2_i32 = arith.constant 2 : i32
    %495 = vector.broadcast %c2_i32 : i32 to vector<1x256xi32>
    %496 = arith.addi %28, %495 : vector<1x256xi32>
    %c0_i32_173 = arith.constant 0 : i32
    %497 = vector.broadcast %c0_i32_173 : i32 to vector<1x256xi32>
    %498 = arith.cmpi sge, %496, %497 : vector<1x256xi32>
    %c2_i32_174 = arith.constant 2 : i32
    %499 = vector.broadcast %c2_i32_174 : i32 to vector<1x256xi32>
    %500 = arith.addi %28, %499 : vector<1x256xi32>
    %c16_i32_175 = arith.constant 16 : i32
    %501 = vector.broadcast %c16_i32_175 : i32 to vector<1x256xi32>
    %502 = arith.cmpi slt, %500, %501 : vector<1x256xi32>
    %503 = arith.andi %498, %502 : vector<1x256xi1>
    %cst_176 = arith.constant 0.000000e+00 : f32
    %504 = vector.shape_cast %503 : vector<1x256xi1> to vector<1x256xi1>
    %505 = vector.broadcast %504 : vector<1x256xi1> to vector<2x256xi1>
    %506 = vector.broadcast %cst_176 : f32 to vector<2x256xf32>
    %507 = arith.select %505, %494, %506 : vector<2x256xi1>, vector<2x256xf32>
    %c0_177 = arith.constant 0 : index
    %c83 = arith.constant 83 : index
    %508 = vector.load %arg4[%c0_177, %c83] : memref<2x512xf32, #tpu.memory_space<vmem>>, vector<2x256xf32>
    %c0_178 = arith.constant 0 : index
    %c83_179 = arith.constant 83 : index
    %509 = vector.load %arg5[%c0_178, %c83_179] : memref<2x512xf32, #tpu.memory_space<vmem>>, vector<2x256xf32>
    %c6 = arith.constant 6 : index
    %510 = memref.load %arg2[%c6] : memref<98xf32, #tpu.memory_space<smem>>
    %511 = vector.broadcast %510 : f32 to vector<2x256xf32>
    %512 = arith.mulf %511, %508 : vector<2x256xf32>
    %c55 = arith.constant 55 : index
    %513 = memref.load %arg2[%c55] : memref<98xf32, #tpu.memory_space<smem>>
    %514 = vector.broadcast %513 : f32 to vector<2x256xf32>
    %515 = arith.mulf %514, %509 : vector<2x256xf32>
    %c0_180 = arith.constant 0 : index
    %c99 = arith.constant 99 : index
    %516 = vector.load %arg4[%c0_180, %c99] : memref<2x512xf32, #tpu.memory_space<vmem>>, vector<2x256xf32>
    %c0_181 = arith.constant 0 : index
    %c99_182 = arith.constant 99 : index
    %517 = vector.load %arg5[%c0_181, %c99_182] : memref<2x512xf32, #tpu.memory_space<vmem>>, vector<2x256xf32>
    %c13 = arith.constant 13 : index
    %518 = memref.load %arg2[%c13] : memref<98xf32, #tpu.memory_space<smem>>
    %519 = vector.broadcast %518 : f32 to vector<2x256xf32>
    %520 = arith.mulf %519, %516 : vector<2x256xf32>
    %c62 = arith.constant 62 : index
    %521 = memref.load %arg2[%c62] : memref<98xf32, #tpu.memory_space<smem>>
    %522 = vector.broadcast %521 : f32 to vector<2x256xf32>
    %523 = arith.mulf %522, %517 : vector<2x256xf32>
    %524 = arith.addf %512, %520 : vector<2x256xf32>
    %525 = arith.addf %515, %523 : vector<2x256xf32>
    %c0_183 = arith.constant 0 : index
    %c115 = arith.constant 115 : index
    %526 = vector.load %arg4[%c0_183, %c115] : memref<2x512xf32, #tpu.memory_space<vmem>>, vector<2x256xf32>
    %c0_184 = arith.constant 0 : index
    %c115_185 = arith.constant 115 : index
    %527 = vector.load %arg5[%c0_184, %c115_185] : memref<2x512xf32, #tpu.memory_space<vmem>>, vector<2x256xf32>
    %c20 = arith.constant 20 : index
    %528 = memref.load %arg2[%c20] : memref<98xf32, #tpu.memory_space<smem>>
    %529 = vector.broadcast %528 : f32 to vector<2x256xf32>
    %530 = arith.mulf %529, %526 : vector<2x256xf32>
    %c69 = arith.constant 69 : index
    %531 = memref.load %arg2[%c69] : memref<98xf32, #tpu.memory_space<smem>>
    %532 = vector.broadcast %531 : f32 to vector<2x256xf32>
    %533 = arith.mulf %532, %527 : vector<2x256xf32>
    %534 = arith.addf %524, %530 : vector<2x256xf32>
    %535 = arith.addf %525, %533 : vector<2x256xf32>
    %c0_186 = arith.constant 0 : index
    %c131 = arith.constant 131 : index
    %536 = vector.load %arg4[%c0_186, %c131] : memref<2x512xf32, #tpu.memory_space<vmem>>, vector<2x256xf32>
    %c0_187 = arith.constant 0 : index
    %c131_188 = arith.constant 131 : index
    %537 = vector.load %arg5[%c0_187, %c131_188] : memref<2x512xf32, #tpu.memory_space<vmem>>, vector<2x256xf32>
    %c27 = arith.constant 27 : index
    %538 = memref.load %arg2[%c27] : memref<98xf32, #tpu.memory_space<smem>>
    %539 = vector.broadcast %538 : f32 to vector<2x256xf32>
    %540 = arith.mulf %539, %536 : vector<2x256xf32>
    %c76 = arith.constant 76 : index
    %541 = memref.load %arg2[%c76] : memref<98xf32, #tpu.memory_space<smem>>
    %542 = vector.broadcast %541 : f32 to vector<2x256xf32>
    %543 = arith.mulf %542, %537 : vector<2x256xf32>
    %544 = arith.addf %534, %540 : vector<2x256xf32>
    %545 = arith.addf %535, %543 : vector<2x256xf32>
    %c0_189 = arith.constant 0 : index
    %c147 = arith.constant 147 : index
    %546 = vector.load %arg4[%c0_189, %c147] : memref<2x512xf32, #tpu.memory_space<vmem>>, vector<2x256xf32>
    %c0_190 = arith.constant 0 : index
    %c147_191 = arith.constant 147 : index
    %547 = vector.load %arg5[%c0_190, %c147_191] : memref<2x512xf32, #tpu.memory_space<vmem>>, vector<2x256xf32>
    %c34 = arith.constant 34 : index
    %548 = memref.load %arg2[%c34] : memref<98xf32, #tpu.memory_space<smem>>
    %549 = vector.broadcast %548 : f32 to vector<2x256xf32>
    %550 = arith.mulf %549, %546 : vector<2x256xf32>
    %c83_192 = arith.constant 83 : index
    %551 = memref.load %arg2[%c83_192] : memref<98xf32, #tpu.memory_space<smem>>
    %552 = vector.broadcast %551 : f32 to vector<2x256xf32>
    %553 = arith.mulf %552, %547 : vector<2x256xf32>
    %554 = arith.addf %544, %550 : vector<2x256xf32>
    %555 = arith.addf %545, %553 : vector<2x256xf32>
    %c0_193 = arith.constant 0 : index
    %c163 = arith.constant 163 : index
    %556 = vector.load %arg4[%c0_193, %c163] : memref<2x512xf32, #tpu.memory_space<vmem>>, vector<2x256xf32>
    %c0_194 = arith.constant 0 : index
    %c163_195 = arith.constant 163 : index
    %557 = vector.load %arg5[%c0_194, %c163_195] : memref<2x512xf32, #tpu.memory_space<vmem>>, vector<2x256xf32>
    %c41 = arith.constant 41 : index
    %558 = memref.load %arg2[%c41] : memref<98xf32, #tpu.memory_space<smem>>
    %559 = vector.broadcast %558 : f32 to vector<2x256xf32>
    %560 = arith.mulf %559, %556 : vector<2x256xf32>
    %c90 = arith.constant 90 : index
    %561 = memref.load %arg2[%c90] : memref<98xf32, #tpu.memory_space<smem>>
    %562 = vector.broadcast %561 : f32 to vector<2x256xf32>
    %563 = arith.mulf %562, %557 : vector<2x256xf32>
    %564 = arith.addf %554, %560 : vector<2x256xf32>
    %565 = arith.addf %555, %563 : vector<2x256xf32>
    %c0_196 = arith.constant 0 : index
    %c179 = arith.constant 179 : index
    %566 = vector.load %arg4[%c0_196, %c179] : memref<2x512xf32, #tpu.memory_space<vmem>>, vector<2x256xf32>
    %c0_197 = arith.constant 0 : index
    %c179_198 = arith.constant 179 : index
    %567 = vector.load %arg5[%c0_197, %c179_198] : memref<2x512xf32, #tpu.memory_space<vmem>>, vector<2x256xf32>
    %c48 = arith.constant 48 : index
    %568 = memref.load %arg2[%c48] : memref<98xf32, #tpu.memory_space<smem>>
    %569 = vector.broadcast %568 : f32 to vector<2x256xf32>
    %570 = arith.mulf %569, %566 : vector<2x256xf32>
    %c97_199 = arith.constant 97 : index
    %571 = memref.load %arg2[%c97_199] : memref<98xf32, #tpu.memory_space<smem>>
    %572 = vector.broadcast %571 : f32 to vector<2x256xf32>
    %573 = arith.mulf %572, %567 : vector<2x256xf32>
    %574 = arith.addf %564, %570 : vector<2x256xf32>
    %575 = arith.addf %565, %573 : vector<2x256xf32>
    %576 = arith.addf %574, %575 : vector<2x256xf32>
    %c3_i32 = arith.constant 3 : i32
    %577 = vector.broadcast %c3_i32 : i32 to vector<1x256xi32>
    %578 = arith.addi %28, %577 : vector<1x256xi32>
    %c0_i32_200 = arith.constant 0 : i32
    %579 = vector.broadcast %c0_i32_200 : i32 to vector<1x256xi32>
    %580 = arith.cmpi sge, %578, %579 : vector<1x256xi32>
    %c3_i32_201 = arith.constant 3 : i32
    %581 = vector.broadcast %c3_i32_201 : i32 to vector<1x256xi32>
    %582 = arith.addi %28, %581 : vector<1x256xi32>
    %c16_i32_202 = arith.constant 16 : i32
    %583 = vector.broadcast %c16_i32_202 : i32 to vector<1x256xi32>
    %584 = arith.cmpi slt, %582, %583 : vector<1x256xi32>
    %585 = arith.andi %580, %584 : vector<1x256xi1>
    %cst_203 = arith.constant 0.000000e+00 : f32
    %586 = vector.shape_cast %585 : vector<1x256xi1> to vector<1x256xi1>
    %587 = vector.broadcast %586 : vector<1x256xi1> to vector<2x256xi1>
    %588 = vector.broadcast %cst_203 : f32 to vector<2x256xf32>
    %589 = arith.select %587, %576, %588 : vector<2x256xi1>, vector<2x256xf32>
    %590 = arith.addf %110, %192 : vector<2x256xf32>
    %591 = arith.addf %274, %343 : vector<2x256xf32>
    %592 = arith.addf %425, %507 : vector<2x256xf32>
    %593 = arith.addf %590, %591 : vector<2x256xf32>
    %594 = arith.addf %592, %589 : vector<2x256xf32>
    %595 = arith.addf %593, %594 : vector<2x256xf32>
    %596 = arith.negf %595 : vector<2x256xf32>
    %597 = math.exp %596 : vector<2x256xf32>
    %cst_204 = arith.constant 1.000000e+00 : f32
    %598 = vector.broadcast %cst_204 : f32 to vector<2x256xf32>
    %599 = arith.addf %598, %597 : vector<2x256xf32>
    %600 = arith.divf %598, %599 : vector<2x256xf32>
    %c0_205 = arith.constant 0 : index
    %c0_206 = arith.constant 0 : index
    %601 = vector.load %arg3[%c0_205, %c0_206] : memref<2x256xf32, #tpu.memory_space<vmem>>, vector<2x256xf32>
    tpu.vector_store %arg3[%c0_205, %c0_206], %600 {strides = array<i32>} : memref<2x256xf32, #tpu.memory_space<vmem>>, vector<2x256xf32>,
    return
  }
  func.func @transform_0(%arg0: i32) -> (i32, i32, i32) {
    %c0_i32 = arith.constant 0 : i32
    %c0_i32_0 = arith.constant 0 : i32
    %c0_i32_1 = arith.constant 0 : i32
    return %arg0, %c0_i32, %c0_i32_0 : i32, i32, i32
  }
  func.func @transform_1(%arg0: i32) -> i32 {
    %c0_i32 = arith.constant 0 : i32
    %c0_i32_0 = arith.constant 0 : i32
    return %c0_i32 : i32
  }
  func.func @transform_2(%arg0: i32) -> (i32, i32) {
    %c0_i32 = arith.constant 0 : i32
    %c0_i32_0 = arith.constant 0 : i32
    return %arg0, %c0_i32 : i32, i32
  }
}

</mosaic_0001>

<llo_original>
// kernel: tpu_custom_call.1
$region0: #{tpu_custom_call.1}
  #allocation0 [shape = 'u32[]', space=smem, size = 0x4, offset = 0x4, fixed_abs, tag = 'smem constant byte address 0x4 - core index']
  #allocation1 [shape = 'u32[144,128]{1,0:T(1,128)}', space=vmem, size = 0x12000, scoped, tag = 'internal scratch']
  #allocation2 [shape = 'f32[2,512]{1,0:T(2,128)}', space=vmem, size = 0x1000, scoped, tag = 'scratch operand']
  #allocation3 [shape = 'f32[2,512]{1,0:T(2,128)}', space=vmem, size = 0x1000, scoped, tag = 'scratch operand']
  %s0 = inlined_call_operand.hbm [shape: f32[2,4,256], index: 0, kind: input, shape index: {}]
  %s1 = inlined_call_operand.hbm [shape: f32[98], index: 1, kind: input, shape index: {}]
  %s2 = inlined_call_operand.hbm [shape: f32[2,256], index: 2, kind: output, shape index: {}]
  %s3 = sld [smem:[#allocation0]]
  $region26: #{tpu_custom_call.1} parent=0
    _
  %s5 = ssub.s32 1, %s3
  %s6 = scalar_select 0, %s5, %s3
  $region1: #{tpu_custom_call.1} parent=0
    #allocation4 [shape = 'u8[8192]{0}', space=vmem, size = 0x2000, scoped, tag = 'input window, operand 0, single buffered']
    #allocation5 [shape = 's32[1]{0}', space=sflag, size = 0x4, scoped, tag = 'scoped memory for tpu_custom_call.1']
    #allocation6 [shape = 's32[1]{0}', space=sflag, size = 0x4, scoped, tag = 'scoped memory for tpu_custom_call.1']
    #allocation7 [shape = 's32[1]{0}', space=sflag, size = 0x4, scoped, tag = 'scoped memory for tpu_custom_call.1']
    #allocation8 [shape = 'u8[512]{0}', space=smem, size = 0x200, scoped, tag = 'input window, operand 1, single buffered']
    #allocation9 [shape = 'u8[2048]{0}', space=vmem, size = 0x800, scoped, tag = 'output window, operand 0, single buffered']
    %7 = vsyncpa [#allocation5], 0
    %8 = vsyncpa [#allocation7], 0
    %9 = vsyncpa [#allocation6], 0
    // Predicated region
    $region2: #{tpu_custom_call.1} parent=1 // pred_check
      _
    $region3: #{tpu_custom_call.1} parent=1 // pred_check_branch
      %11 = sbr.rel (0) target = $region5
    $region4: #{tpu_custom_call.1} parent=1 // pred_region
      %s13 = ssub.s32 256, 256
      %14 = vsyncadd [#allocation5], %s13
      %s15 = sshll.u32 [#allocation4], 4
      %s16 = int_to_ptr.vmem [resolvable:$true] %s15
      %21 = dma.hbm_to_vmem [thread:$0]  %s0, 256, %s16, [#allocation5], 128, 128, 8
    $region5: #{tpu_custom_call.1} parent=1 // pred_fallthru
      _
    // Predicated region
    $region6: #{tpu_custom_call.1} parent=1 // pred_check
      _
    $region7: #{tpu_custom_call.1} parent=1 // pred_check_branch
      %23 = sbr.rel (0) target = $region9
    $region8: #{tpu_custom_call.1} parent=1 // pred_region
      %s25 = ssub.s32 16, 16
      %26 = vsyncadd [#allocation7], %s25
      %29 = dma.hbm_to_smem %s1, 16, [#allocation8], [#allocation7]
    $region9: #{tpu_custom_call.1} parent=1 // pred_fallthru
      _
    // Predicated region
    $region10: #{tpu_custom_call.1} parent=1 // pred_check
      _
    $region11: #{tpu_custom_call.1} parent=1 // pred_check_branch
      %31 = sbr.rel (0) target = $region13
    $region12: #{tpu_custom_call.1} parent=1 // pred_region
      %32 = dma.done [#allocation5], 256
    $region13: #{tpu_custom_call.1} parent=1 // pred_fallthru
      _
    // Predicated region
    $region14: #{tpu_custom_call.1} parent=1 // pred_check
      _
    $region15: #{tpu_custom_call.1} parent=1 // pred_check_branch
      %34 = sbr.rel (0) target = $region17
    $region16: #{tpu_custom_call.1} parent=1 // pred_region
      %35 = dma.done [#allocation7], 16
    $region17: #{tpu_custom_call.1} parent=1 // pred_fallthru
      _
    %36 = sfence
    %v37 = vld [vmem:[#allocation4] sm:$0xff]
    %v38 = vld [vmem:[#allocation4 + $0x8] sm:$0xff]
    %v41 = vcombine.high %v37, %v37
    %v42 = vcombine.high %v38, %v38
    %vm45 = vcmask 1043456
    %v46 = vsel %vm45, %v37, 0.0
    %v47 = vrot.slane %v46, 4
    %v48 = vadd.f32 %v46, %v47
    %v49 = vrot.slane %v48, 2
    %v50 = vadd.f32 %v48, %v49
    %v51 = vrot.slane %v50, 1
    %v52 = vadd.f32 %v50, %v51
    %v53 = vsel %vm45, %v41, 0.0
    %v54 = vrot.slane %v53, 4
    %v55 = vadd.f32 %v53, %v54
    %v56 = vrot.slane %v55, 2
    %v57 = vadd.f32 %v55, %v56
    %v58 = vrot.slane %v57, 1
    %v59 = vadd.f32 %v57, %v58
    %v60 = vsel %vm45, %v38, 0.0
    %v61 = vrot.slane %v60, 4
    %v62 = vadd.f32 %v60, %v61
    %v63 = vrot.slane %v62, 2
    %v64 = vadd.f32 %v62, %v63
    %v65 = vrot.slane %v64, 1
    %v66 = vadd.f32 %v64, %v65
    %v67 = vsel %vm45, %v42, 0.0
    %v68 = vrot.slane %v67, 4
    %v69 = vadd.f32 %v67, %v68
    %v70 = vrot.slane %v69, 2
    %v71 = vadd.f32 %v69, %v70
    %v72 = vrot.slane %v71, 1
    %v73 = vadd.f32 %v71, %v72
    %v74 = vmul.f32 %v52, 0.25
    %v75 = vmul.f32 %v59, 0.25
    %v76 = vmul.f32 %v66, 0.25
    %v77 = vmul.f32 %v73, 0.25
    %v78 = vsel %vm45, %v37, -inf
    %v79 = vrot.slane %v78, 4
    %v80 = vmax.f32 %v78, %v79
    %v81 = vrot.slane %v80, 2
    %v82 = vmax.f32 %v80, %v81
    %v83 = vrot.slane %v82, 1
    %v84 = vmax.f32 %v82, %v83
    %v85 = vsel %vm45, %v41, -inf
    %v86 = vrot.slane %v85, 4
    %v87 = vmax.f32 %v85, %v86
    %v88 = vrot.slane %v87, 2
    %v89 = vmax.f32 %v87, %v88
    %v90 = vrot.slane %v89, 1
    %v91 = vmax.f32 %v89, %v90
    %v92 = vsel %vm45, %v38, -inf
    %v93 = vrot.slane %v92, 4
    %v94 = vmax.f32 %v92, %v93
    %v95 = vrot.slane %v94, 2
    %v96 = vmax.f32 %v94, %v95
    %v97 = vrot.slane %v96, 1
    %v98 = vmax.f32 %v96, %v97
    %v99 = vsel %vm45, %v42, -inf
    %v100 = vrot.slane %v99, 4
    %v101 = vmax.f32 %v99, %v100
    %v102 = vrot.slane %v101, 2
    %v103 = vmax.f32 %v101, %v102
    %v104 = vrot.slane %v103, 1
    %v105 = vmax.f32 %v103, %v104
    %106 = vst [vmem:[#allocation2] sm:$0x3] 0.0
    %107 = vst [vmem:[#allocation3] sm:$0x3] 0.0
    %108 = vst [vmem:[#allocation2 + $0x6] sm:$0x3] 0.0
    %109 = vst [vmem:[#allocation3 + $0x6] sm:$0x3] 0.0
    %v114 = vcombine.low %v74, %v75
    %v116 = vunpack.c.l.s4 1983009808
    %v117 = vunpack.c.0.s8 %v116
    %v118 = vlaneseq
    %v119 = vshrl.u32 %v118, 7
    %v120 = vsub.s32 %v117, %v119
    %v121 = vrot.slane %v114, %v120
    %v122 = vcombine.low %v76, %v77
    %v124 = vunpack.c.l.s4 1983009808
    %v125 = vunpack.c.0.s8 %v124
    %v126 = vlaneseq
    %v127 = vshrl.u32 %v126, 7
    %v128 = vsub.s32 %v125, %v127
    %v129 = vrot.slane %v122, %v128
    %vm130 = vcmask 1044484
    %v131 = vsel %vm130, %v121, %v121
    %vm132 = vcmask 1046534
    %v133 = vsel %vm132, %v121, %v131
    %v134 = vrot.slane %v129, 7
    %vm135 = vcmask 1041409
    %v136 = vsel %vm135, %v134, %v133
    %vm137 = vcmask 1043459
    %v138 = vsel %vm137, %v134, %v136
    %vm139 = vcmask 1045509
    %v140 = vsel %vm139, %v134, %v138
    %vm141 = vcmask 1047559
    %v142 = vsel %vm141, %v134, %v140
    %144 = vst [vmem:[#allocation2 + $0x2] sm:$0xf] %v142
    %v149 = vcombine.low %v84, %v91
    %v151 = vunpack.c.l.s4 1983009808
    %v152 = vunpack.c.0.s8 %v151
    %v153 = vlaneseq
    %v154 = vshrl.u32 %v153, 7
    %v155 = vsub.s32 %v152, %v154
    %v156 = vrot.slane %v149, %v155
    %v157 = vcombine.low %v98, %v105
    %v159 = vunpack.c.l.s4 1983009808
    %v160 = vunpack.c.0.s8 %v159
    %v161 = vlaneseq
    %v162 = vshrl.u32 %v161, 7
    %v163 = vsub.s32 %v160, %v162
    %v164 = vrot.slane %v157, %v163
    %v165 = vsel %vm130, %v156, %v156
    %v166 = vsel %vm132, %v156, %v165
    %v167 = vrot.slane %v164, 7
    %v168 = vsel %vm135, %v167, %v166
    %v169 = vsel %vm137, %v167, %v168
    %v170 = vsel %vm139, %v167, %v169
    %v171 = vsel %vm141, %v167, %v170
    %173 = vst [vmem:[#allocation3 + $0x2] sm:$0xf] %v171
    %v174 = vlaneseq
    %v175 = vand.u32 %v174, 127
    %v176 = vadd.s32 %v175, 128
    %vm177 = vcmp.lt.s32.totalorder %v175, 0
    %v178 = vsub.s32 0, %v175
    %v179 = vsel %vm177, %v178, %v175
    %v180 = vshrl.u32 %v179, 4
    %v181 = vand.u32 %v179, 15
    %v182 = vsub.s32 0, %v181
    %v183 = vsel %vm177, %v182, %v181
    %vm184 = vcmp.lt.s32.totalorder %v176, 0
    %v185 = vsub.s32 0, %v176
    %v186 = vsel %vm184, %v185, %v176
    %v187 = vshrl.u32 %v186, 4
    %v188 = vand.u32 %v186, 15
    %v189 = vsub.s32 0, %v188
    %v190 = vsel %vm184, %v189, %v188
    %vm191 = vcmp.ne.s32.totalorder %v183, 0
    %vm192 = vcmp.ne.s32.totalorder %v190, 0
    %vm193 = vcmp.lt.s32.totalorder %v183, 0
    %vm194 = vcmp.lt.s32.totalorder %v190, 0
    %vm195 = vmand %vm193, %vm191
    %vm196 = vmand %vm194, %vm192
    %v197 = vadd.s32 %v183, 16
    %v198 = vadd.s32 %v190, 16
    %v199 = vsel %vm195, %v197, %v183
    %v200 = vsel %vm196, %v198, %v190
    %v201 = vld [vmem:[#allocation2] sm:$0x3f]
    %v202 = vld [vmem:[#allocation3] sm:$0x3f]
    %s203 = sld [smem:[#allocation8]]
    %v204 = vstv %s203
    %v205 = vmul.f32 %v204, %v201
    %s206 = sld [smem:[#allocation8 + $0x31]]
    %v207 = vstv %s206
    %v208 = vmul.f32 %v207, %v202
    %s209 = sld [smem:[#allocation8 + $0x7]]
    %v210 = vstv %s209
    %v211 = vmul.f32 %v210, %v201
    %s212 = sld [smem:[#allocation8 + $0x38]]
    %v213 = vstv %s212
    %v214 = vmul.f32 %v213, %v202
    %216 = vrot.lane.b32.xlu0 %v211, 112
    %v217 = vpop.permute.xlu0 %216
    %v218 = vrot.slane %v217, 2
    %vm219 = vcmask 916480
    %v220 = vsel %vm219, %v217, %v218
    %v222 = vadd.f32 %v205, %v220
    %224 = vrot.lane.b32.xlu0 %v214, 112
    %v225 = vpop.permute.xlu0 %224
    %v226 = vrot.slane %v225, 2
    %v227 = vsel %vm219, %v225, %v226
    %v229 = vadd.f32 %v208, %v227
    %s230 = sld [smem:[#allocation8 + $0xe]]
    %v231 = vstv %s230
    %v232 = vmul.f32 %v231, %v201
    %s233 = sld [smem:[#allocation8 + $0x3f]]
    %v234 = vstv %s233
    %v235 = vmul.f32 %v234, %v202
    %237 = vrot.lane.b32.xlu0 %v232, 96
    %v238 = vpop.permute.xlu0 %237
    %v239 = vrot.slane %v238, 2
    %vm240 = vcmask 785408
    %v241 = vsel %vm240, %v238, %v239
    %v243 = vadd.f32 %v222, %v241
    %245 = vrot.lane.b32.xlu0 %v235, 96
    %v246 = vpop.permute.xlu0 %245
    %v247 = vrot.slane %v246, 2
    %v248 = vsel %vm240, %v246, %v247
    %v250 = vadd.f32 %v229, %v248
    %s251 = sld [smem:[#allocation8 + $0x15]]
    %v252 = vstv %s251
    %v253 = vmul.f32 %v252, %v201
    %s254 = sld [smem:[#allocation8 + $0x46]]
    %v255 = vstv %s254
    %v256 = vmul.f32 %v255, %v202
    %258 = vrot.lane.b32.xlu0 %v253, 80
    %v259 = vpop.permute.xlu0 %258
    %v260 = vrot.slane %v259, 2
    %vm261 = vcmask 654336
    %v262 = vsel %vm261, %v259, %v260
    %v264 = vadd.f32 %v243, %v262
    %266 = vrot.lane.b32.xlu0 %v256, 80
    %v267 = vpop.permute.xlu0 %266
    %v268 = vrot.slane %v267, 2
    %v269 = vsel %vm261, %v267, %v268
    %v271 = vadd.f32 %v250, %v269
    %v272 = vld [vmem:[#allocation2 + $0x2] sm:$0x3f]
    %v273 = vld [vmem:[#allocation3 + $0x2] sm:$0x3f]
    %s274 = sld [smem:[#allocation8 + $0x1c]]
    %v275 = vstv %s274
    %v276 = vmul.f32 %v275, %v272
    %s277 = sld [smem:[#allocation8 + $0x4d]]
    %v278 = vstv %s277
    %v279 = vmul.f32 %v278, %v273
    %281 = vrot.lane.b32.xlu0 %v276, 64
    %v282 = vpop.permute.xlu0 %281
    %v283 = vrot.slane %v282, 6
    %vm284 = vcmask 523264
    %v285 = vsel %vm284, %v283, %v282
    %v287 = vadd.f32 %v264, %v285
    %289 = vrot.lane.b32.xlu0 %v279, 64
    %v290 = vpop.permute.xlu0 %289
    %v291 = vrot.slane %v290, 6
    %v292 = vsel %vm284, %v291, %v290
    %v294 = vadd.f32 %v271, %v292
    %s295 = sld [smem:[#allocation8 + $0x23]]
    %v296 = vstv %s295
    %v297 = vmul.f32 %v296, %v272
    %s298 = sld [smem:[#allocation8 + $0x54]]
    %v299 = vstv %s298
    %v300 = vmul.f32 %v299, %v273
    %302 = vrot.lane.b32.xlu0 %v297, 48
    %v303 = vpop.permute.xlu0 %302
    %v304 = vrot.slane %v303, 6
    %vm305 = vcmask 392192
    %v306 = vsel %vm305, %v304, %v303
    %v308 = vadd.f32 %v287, %v306
    %310 = vrot.lane.b32.xlu0 %v300, 48
    %v311 = vpop.permute.xlu0 %310
    %v312 = vrot.slane %v311, 6
    %v313 = vsel %vm305, %v312, %v311
    %v315 = vadd.f32 %v294, %v313
    %s316 = sld [smem:[#allocation8 + $0x2a]]
    %v317 = vstv %s316
    %v318 = vmul.f32 %v317, %v272
    %s319 = sld [smem:[#allocation8 + $0x5b]]
    %v320 = vstv %s319
    %v321 = vmul.f32 %v320, %v273
    %323 = vrot.lane.b32.xlu0 %v318, 32
    %v324 = vpop.permute.xlu0 %323
    %v325 = vrot.slane %v324, 6
    %vm326 = vcmask 261120
    %v327 = vsel %vm326, %v325, %v324
    %v329 = vadd.f32 %v308, %v327
    %331 = vrot.lane.b32.xlu0 %v321, 32
    %v332 = vpop.permute.xlu0 %331
    %v333 = vrot.slane %v332, 6
    %v334 = vsel %vm326, %v333, %v332
    %v336 = vadd.f32 %v315, %v334
    %v337 = vadd.f32 %v329, %v336
    %v338 = vadd.s32 %v199, 4294967293
    %v339 = vadd.s32 %v200, 4294967293
    %vm340 = vcmp.ge.s32.totalorder %v338, 0
    %vm341 = vcmp.ge.s32.totalorder %v339, 0
    %vm342 = vcmp.lt.s32.totalorder %v338, 16
    %vm343 = vcmp.lt.s32.totalorder %v339, 16
    %vm344 = vmand %vm340, %vm342
    %vm345 = vmand %vm341, %vm343
    %v346 = vsel %vm344, 1, 0
    %v347 = vsel %vm345, 1, 0
    %vm348 = vcmp.eq.s32.totalorder %v346, 1
    %vm349 = vcmp.eq.s32.totalorder %v347, 1
    %v351 = vcombine.high %v337, %v337
    %v353 = vunpack.c.l.s4 1983009808
    %v354 = vunpack.c.0.s8 %v353
    %v355 = vlaneseq
    %v356 = vshrl.u32 %v355, 7
    %v357 = vsub.s32 %v354, %v356
    %v358 = vrot.slane %v337, %v357
    %v360 = vunpack.c.l.s4 1983009808
    %v361 = vunpack.c.0.s8 %v360
    %v362 = vlaneseq
    %v363 = vshrl.u32 %v362, 7
    %v364 = vsub.s32 %v361, %v363
    %v365 = vrot.slane %v351, %v364
    %v366 = vcombine.high %v358, %v358
    %367 = vrot.lane.b32.xlu0 %v358, 51
    %v368 = vpop.permute.xlu0 %367
    %369 = vrot.lane.b32.xlu0 %v366, 51
    %v370 = vpop.permute.xlu0 %369
    %371 = vrot.lane.b32.xlu0 %v365, 51
    %v372 = vpop.permute.xlu0 %371
    %vm373 = vcmask 416768
    %v374 = vsel %vm373, %v368, %v370
    %v375 = vsel %vm373, %v370, %v372
    %v378 = vsel %vm348, %v374, 0.0
    %v379 = vsel %vm349, %v375, 0.0
    %v380 = vld [vmem:[#allocation2] sm:$0x3f]
    %v381 = vld [vmem:[#allocation3] sm:$0x3f]
    %s382 = sld [smem:[#allocation8 + $0x1]]
    %v383 = vstv %s382
    %v384 = vmul.f32 %v383, %v380
    %s385 = sld [smem:[#allocation8 + $0x32]]
    %v386 = vstv %s385
    %v387 = vmul.f32 %v386, %v381
    %s388 = sld [smem:[#allocation8 + $0x8]]
    %v389 = vstv %s388
    %v390 = vmul.f32 %v389, %v380
    %s391 = sld [smem:[#allocation8 + $0x39]]
    %v392 = vstv %s391
    %v393 = vmul.f32 %v392, %v381
    %395 = vrot.lane.b32.xlu0 %v390, 112
    %v396 = vpop.permute.xlu0 %395
    %v397 = vrot.slane %v396, 2
    %v398 = vsel %vm219, %v396, %v397
    %v400 = vadd.f32 %v384, %v398
    %402 = vrot.lane.b32.xlu0 %v393, 112
    %v403 = vpop.permute.xlu0 %402
    %v404 = vrot.slane %v403, 2
    %v405 = vsel %vm219, %v403, %v404
    %v407 = vadd.f32 %v387, %v405
    %s408 = sld [smem:[#allocation8 + $0xf]]
    %v409 = vstv %s408
    %v410 = vmul.f32 %v409, %v380
    %s411 = sld [smem:[#allocation8 + $0x40]]
    %v412 = vstv %s411
    %v413 = vmul.f32 %v412, %v381
    %415 = vrot.lane.b32.xlu0 %v410, 96
    %v416 = vpop.permute.xlu0 %415
    %v417 = vrot.slane %v416, 2
    %v418 = vsel %vm240, %v416, %v417
    %v420 = vadd.f32 %v400, %v418
    %422 = vrot.lane.b32.xlu0 %v413, 96
    %v423 = vpop.permute.xlu0 %422
    %v424 = vrot.slane %v423, 2
    %v425 = vsel %vm240, %v423, %v424
    %v427 = vadd.f32 %v407, %v425
    %s428 = sld [smem:[#allocation8 + $0x16]]
    %v429 = vstv %s428
    %v430 = vmul.f32 %v429, %v380
    %s431 = sld [smem:[#allocation8 + $0x47]]
    %v432 = vstv %s431
    %v433 = vmul.f32 %v432, %v381
    %435 = vrot.lane.b32.xlu0 %v430, 80
    %v436 = vpop.permute.xlu0 %435
    %v437 = vrot.slane %v436, 2
    %v438 = vsel %vm261, %v436, %v437
    %v440 = vadd.f32 %v420, %v438
    %442 = vrot.lane.b32.xlu0 %v433, 80
    %v443 = vpop.permute.xlu0 %442
    %v444 = vrot.slane %v443, 2
    %v445 = vsel %vm261, %v443, %v444
    %v447 = vadd.f32 %v427, %v445
    %v448 = vld [vmem:[#allocation2 + $0x2] sm:$0x3f]
    %v449 = vld [vmem:[#allocation3 + $0x2] sm:$0x3f]
    %s450 = sld [smem:[#allocation8 + $0x1d]]
    %v451 = vstv %s450
    %v452 = vmul.f32 %v451, %v448
    %s453 = sld [smem:[#allocation8 + $0x4e]]
    %v454 = vstv %s453
    %v455 = vmul.f32 %v454, %v449
    %457 = vrot.lane.b32.xlu0 %v452, 64
    %v458 = vpop.permute.xlu0 %457
    %v459 = vrot.slane %v458, 6
    %v460 = vsel %vm284, %v459, %v458
    %v462 = vadd.f32 %v440, %v460
    %464 = vrot.lane.b32.xlu0 %v455, 64
    %v465 = vpop.permute.xlu0 %464
    %v466 = vrot.slane %v465, 6
    %v467 = vsel %vm284, %v466, %v465
    %v469 = vadd.f32 %v447, %v467
    %s470 = sld [smem:[#allocation8 + $0x24]]
    %v471 = vstv %s470
    %v472 = vmul.f32 %v471, %v448
    %s473 = sld [smem:[#allocation8 + $0x55]]
    %v474 = vstv %s473
    %v475 = vmul.f32 %v474, %v449
    %477 = vrot.lane.b32.xlu0 %v472, 48
    %v478 = vpop.permute.xlu0 %477
    %v479 = vrot.slane %v478, 6
    %v480 = vsel %vm305, %v479, %v478
    %v482 = vadd.f32 %v462, %v480
    %484 = vrot.lane.b32.xlu0 %v475, 48
    %v485 = vpop.permute.xlu0 %484
    %v486 = vrot.slane %v485, 6
    %v487 = vsel %vm305, %v486, %v485
    %v489 = vadd.f32 %v469, %v487
    %s490 = sld [smem:[#allocation8 + $0x2b]]
    %v491 = vstv %s490
    %v492 = vmul.f32 %v491, %v448
    %s493 = sld [smem:[#allocation8 + $0x5c]]
    %v494 = vstv %s493
    %v495 = vmul.f32 %v494, %v449
    %497 = vrot.lane.b32.xlu0 %v492, 32
    %v498 = vpop.permute.xlu0 %497
    %v499 = vrot.slane %v498, 6
    %v500 = vsel %vm326, %v499, %v498
    %v502 = vadd.f32 %v482, %v500
    %504 = vrot.lane.b32.xlu0 %v495, 32
    %v505 = vpop.permute.xlu0 %504
    %v506 = vrot.slane %v505, 6
    %v507 = vsel %vm326, %v506, %v505
    %v509 = vadd.f32 %v489, %v507
    %v510 = vadd.f32 %v502, %v509
    %v511 = vadd.s32 %v199, 4294967294
    %v512 = vadd.s32 %v200, 4294967294
    %vm513 = vcmp.ge.s32.totalorder %v511, 0
    %vm514 = vcmp.ge.s32.totalorder %v512, 0
    %vm515 = vcmp.lt.s32.totalorder %v511, 16
    %vm516 = vcmp.lt.s32.totalorder %v512, 16
    %vm517 = vmand %vm513, %vm515
    %vm518 = vmand %vm514, %vm516
    %v519 = vsel %vm517, 1, 0
    %v520 = vsel %vm518, 1, 0
    %vm521 = vcmp.eq.s32.totalorder %v519, 1
    %vm522 = vcmp.eq.s32.totalorder %v520, 1
    %v524 = vcombine.high %v510, %v510
    %v526 = vunpack.c.l.s4 1983009808
    %v527 = vunpack.c.0.s8 %v526
    %v528 = vlaneseq
    %v529 = vshrl.u32 %v528, 7
    %v530 = vsub.s32 %v527, %v529
    %v531 = vrot.slane %v510, %v530
    %v533 = vunpack.c.l.s4 1983009808
    %v534 = vunpack.c.0.s8 %v533
    %v535 = vlaneseq
    %v536 = vshrl.u32 %v535, 7
    %v537 = vsub.s32 %v534, %v536
    %v538 = vrot.slane %v524, %v537
    %v539 = vcombine.high %v531, %v531
    %540 = vrot.lane.b32.xlu0 %v531, 50
    %v541 = vpop.permute.xlu0 %540
    %542 = vrot.lane.b32.xlu0 %v539, 50
    %v543 = vpop.permute.xlu0 %542
    %544 = vrot.lane.b32.xlu0 %v538, 50
    %v545 = vpop.permute.xlu0 %544
    %vm546 = vcmask 408576
    %v547 = vsel %vm546, %v541, %v543
    %v548 = vsel %vm546, %v543, %v545
    %v551 = vsel %vm521, %v547, 0.0
    %v552 = vsel %vm522, %v548, 0.0
    %v553 = vld [vmem:[#allocation2] sm:$0x3f]
    %v554 = vld [vmem:[#allocation3] sm:$0x3f]
    %s555 = sld [smem:[#allocation8 + $0x2]]
    %v556 = vstv %s555
    %v557 = vmul.f32 %v556, %v553
    %s558 = sld [smem:[#allocation8 + $0x33]]
    %v559 = vstv %s558
    %v560 = vmul.f32 %v559, %v554
    %s561 = sld [smem:[#allocation8 + $0x9]]
    %v562 = vstv %s561
    %v563 = vmul.f32 %v562, %v553
    %s564 = sld [smem:[#allocation8 + $0x3a]]
    %v565 = vstv %s564
    %v566 = vmul.f32 %v565, %v554
    %568 = vrot.lane.b32.xlu0 %v563, 112
    %v569 = vpop.permute.xlu0 %568
    %v570 = vrot.slane %v569, 2
    %v571 = vsel %vm219, %v569, %v570
    %v573 = vadd.f32 %v557, %v571
    %575 = vrot.lane.b32.xlu0 %v566, 112
    %v576 = vpop.permute.xlu0 %575
    %v577 = vrot.slane %v576, 2
    %v578 = vsel %vm219, %v576, %v577
    %v580 = vadd.f32 %v560, %v578
    %s581 = sld [smem:[#allocation8 + $0x10]]
    %v582 = vstv %s581
    %v583 = vmul.f32 %v582, %v553
    %s584 = sld [smem:[#allocation8 + $0x41]]
    %v585 = vstv %s584
    %v586 = vmul.f32 %v585, %v554
    %588 = vrot.lane.b32.xlu0 %v583, 96
    %v589 = vpop.permute.xlu0 %588
    %v590 = vrot.slane %v589, 2
    %v591 = vsel %vm240, %v589, %v590
    %v593 = vadd.f32 %v573, %v591
    %595 = vrot.lane.b32.xlu0 %v586, 96
    %v596 = vpop.permute.xlu0 %595
    %v597 = vrot.slane %v596, 2
    %v598 = vsel %vm240, %v596, %v597
    %v600 = vadd.f32 %v580, %v598
    %s601 = sld [smem:[#allocation8 + $0x17]]
    %v602 = vstv %s601
    %v603 = vmul.f32 %v602, %v553
    %s604 = sld [smem:[#allocation8 + $0x48]]
    %v605 = vstv %s604
    %v606 = vmul.f32 %v605, %v554
    %608 = vrot.lane.b32.xlu0 %v603, 80
    %v609 = vpop.permute.xlu0 %608
    %v610 = vrot.slane %v609, 2
    %v611 = vsel %vm261, %v609, %v610
    %v613 = vadd.f32 %v593, %v611
    %615 = vrot.lane.b32.xlu0 %v606, 80
    %v616 = vpop.permute.xlu0 %615
    %v617 = vrot.slane %v616, 2
    %v618 = vsel %vm261, %v616, %v617
    %v620 = vadd.f32 %v600, %v618
    %v621 = vld [vmem:[#allocation2 + $0x2] sm:$0x3f]
    %v622 = vld [vmem:[#allocation3 + $0x2] sm:$0x3f]
    %s623 = sld [smem:[#allocation8 + $0x1e]]
    %v624 = vstv %s623
    %v625 = vmul.f32 %v624, %v621
    %s626 = sld [smem:[#allocation8 + $0x4f]]
    %v627 = vstv %s626
    %v628 = vmul.f32 %v627, %v622
    %630 = vrot.lane.b32.xlu0 %v625, 64
    %v631 = vpop.permute.xlu0 %630
    %v632 = vrot.slane %v631, 6
    %v633 = vsel %vm284, %v632, %v631
    %v635 = vadd.f32 %v613, %v633
    %637 = vrot.lane.b32.xlu0 %v628, 64
    %v638 = vpop.permute.xlu0 %637
    %v639 = vrot.slane %v638, 6
    %v640 = vsel %vm284, %v639, %v638
    %v642 = vadd.f32 %v620, %v640
    %s643 = sld [smem:[#allocation8 + $0x25]]
    %v644 = vstv %s643
    %v645 = vmul.f32 %v644, %v621
    %s646 = sld [smem:[#allocation8 + $0x56]]
    %v647 = vstv %s646
    %v648 = vmul.f32 %v647, %v622
    %650 = vrot.lane.b32.xlu0 %v645, 48
    %v651 = vpop.permute.xlu0 %650
    %v652 = vrot.slane %v651, 6
    %v653 = vsel %vm305, %v652, %v651
    %v655 = vadd.f32 %v635, %v653
    %657 = vrot.lane.b32.xlu0 %v648, 48
    %v658 = vpop.permute.xlu0 %657
    %v659 = vrot.slane %v658, 6
    %v660 = vsel %vm305, %v659, %v658
    %v662 = vadd.f32 %v642, %v660
    %s663 = sld [smem:[#allocation8 + $0x2c]]
    %v664 = vstv %s663
    %v665 = vmul.f32 %v664, %v621
    %s666 = sld [smem:[#allocation8 + $0x5d]]
    %v667 = vstv %s666
    %v668 = vmul.f32 %v667, %v622
    %670 = vrot.lane.b32.xlu0 %v665, 32
    %v671 = vpop.permute.xlu0 %670
    %v672 = vrot.slane %v671, 6
    %v673 = vsel %vm326, %v672, %v671
    %v675 = vadd.f32 %v655, %v673
    %677 = vrot.lane.b32.xlu0 %v668, 32
    %v678 = vpop.permute.xlu0 %677
    %v679 = vrot.slane %v678, 6
    %v680 = vsel %vm326, %v679, %v678
    %v682 = vadd.f32 %v662, %v680
    %v683 = vadd.f32 %v675, %v682
    %v684 = vadd.s32 %v199, 4294967295
    %v685 = vadd.s32 %v200, 4294967295
    %vm686 = vcmp.ge.s32.totalorder %v684, 0
    %vm687 = vcmp.ge.s32.totalorder %v685, 0
    %vm688 = vcmp.lt.s32.totalorder %v684, 16
    %vm689 = vcmp.lt.s32.totalorder %v685, 16
    %vm690 = vmand %vm686, %vm688
    %vm691 = vmand %vm687, %vm689
    %v692 = vsel %vm690, 1, 0
    %v693 = vsel %vm691, 1, 0
    %vm694 = vcmp.eq.s32.totalorder %v692, 1
    %vm695 = vcmp.eq.s32.totalorder %v693, 1
    %v697 = vcombine.high %v683, %v683
    %v699 = vunpack.c.l.s4 1983009808
    %v700 = vunpack.c.0.s8 %v699
    %v701 = vlaneseq
    %v702 = vshrl.u32 %v701, 7
    %v703 = vsub.s32 %v700, %v702
    %v704 = vrot.slane %v683, %v703
    %v706 = vunpack.c.l.s4 1983009808
    %v707 = vunpack.c.0.s8 %v706
    %v708 = vlaneseq
    %v709 = vshrl.u32 %v708, 7
    %v710 = vsub.s32 %v707, %v709
    %v711 = vrot.slane %v697, %v710
    %v712 = vcombine.high %v704, %v704
    %713 = vrot.lane.b32.xlu0 %v704, 49
    %v714 = vpop.permute.xlu0 %713
    %715 = vrot.lane.b32.xlu0 %v712, 49
    %v716 = vpop.permute.xlu0 %715
    %717 = vrot.lane.b32.xlu0 %v711, 49
    %v718 = vpop.permute.xlu0 %717
    %vm719 = vcmask 400384
    %v720 = vsel %vm719, %v714, %v716
    %v721 = vsel %vm719, %v716, %v718
    %v724 = vsel %vm694, %v720, 0.0
    %v725 = vsel %vm695, %v721, 0.0
    %v726 = vld [vmem:[#allocation2] sm:$0x3f]
    %v727 = vld [vmem:[#allocation3] sm:$0x3f]
    %s728 = sld [smem:[#allocation8 + $0x3]]
    %v729 = vstv %s728
    %v730 = vmul.f32 %v729, %v726
    %s731 = sld [smem:[#allocation8 + $0x34]]
    %v732 = vstv %s731
    %v733 = vmul.f32 %v732, %v727
    %s734 = sld [smem:[#allocation8 + $0xa]]
    %v735 = vstv %s734
    %v736 = vmul.f32 %v735, %v726
    %s737 = sld [smem:[#allocation8 + $0x3b]]
    %v738 = vstv %s737
    %v739 = vmul.f32 %v738, %v727
    %741 = vrot.lane.b32.xlu0 %v736, 112
    %v742 = vpop.permute.xlu0 %741
    %v743 = vrot.slane %v742, 2
    %v744 = vsel %vm219, %v742, %v743
    %v746 = vadd.f32 %v730, %v744
    %748 = vrot.lane.b32.xlu0 %v739, 112
    %v749 = vpop.permute.xlu0 %748
    %v750 = vrot.slane %v749, 2
    %v751 = vsel %vm219, %v749, %v750
    %v753 = vadd.f32 %v733, %v751
    %s754 = sld [smem:[#allocation8 + $0x11]]
    %v755 = vstv %s754
    %v756 = vmul.f32 %v755, %v726
    %s757 = sld [smem:[#allocation8 + $0x42]]
    %v758 = vstv %s757
    %v759 = vmul.f32 %v758, %v727
    %761 = vrot.lane.b32.xlu0 %v756, 96
    %v762 = vpop.permute.xlu0 %761
    %v763 = vrot.slane %v762, 2
    %v764 = vsel %vm240, %v762, %v763
    %v766 = vadd.f32 %v746, %v764
    %768 = vrot.lane.b32.xlu0 %v759, 96
    %v769 = vpop.permute.xlu0 %768
    %v770 = vrot.slane %v769, 2
    %v771 = vsel %vm240, %v769, %v770
    %v773 = vadd.f32 %v753, %v771
    %v774 = vld [vmem:[#allocation2 + $0x2] sm:$0xf]
    %v775 = vld [vmem:[#allocation3 + $0x2] sm:$0xf]
    %s776 = sld [smem:[#allocation8 + $0x18]]
    %v777 = vstv %s776
    %v778 = vmul.f32 %v777, %v774
    %s779 = sld [smem:[#allocation8 + $0x49]]
    %v780 = vstv %s779
    %v781 = vmul.f32 %v780, %v775
    %783 = vrot.lane.b32.xlu0 %v778, 80
    %v784 = vpop.permute.xlu0 %783
    %v785 = vrot.slane %v784, 6
    %v786 = vsel %vm261, %v785, %v784
    %v788 = vadd.f32 %v766, %v786
    %790 = vrot.lane.b32.xlu0 %v781, 80
    %v791 = vpop.permute.xlu0 %790
    %v792 = vrot.slane %v791, 6
    %v793 = vsel %vm261, %v792, %v791
    %v795 = vadd.f32 %v773, %v793
    %v796 = vld [vmem:[#allocation2 + $0x2] sm:$0x3f]
    %v797 = vld [vmem:[#allocation3 + $0x2] sm:$0x3f]
    %s798 = sld [smem:[#allocation8 + $0x1f]]
    %v799 = vstv %s798
    %v800 = vmul.f32 %v799, %v796
    %s801 = sld [smem:[#allocation8 + $0x50]]
    %v802 = vstv %s801
    %v803 = vmul.f32 %v802, %v797
    %805 = vrot.lane.b32.xlu0 %v800, 64
    %v806 = vpop.permute.xlu0 %805
    %v807 = vrot.slane %v806, 6
    %v808 = vsel %vm284, %v807, %v806
    %v810 = vadd.f32 %v788, %v808
    %812 = vrot.lane.b32.xlu0 %v803, 64
    %v813 = vpop.permute.xlu0 %812
    %v814 = vrot.slane %v813, 6
    %v815 = vsel %vm284, %v814, %v813
    %v817 = vadd.f32 %v795, %v815
    %s818 = sld [smem:[#allocation8 + $0x26]]
    %v819 = vstv %s818
    %v820 = vmul.f32 %v819, %v796
    %s821 = sld [smem:[#allocation8 + $0x57]]
    %v822 = vstv %s821
    %v823 = vmul.f32 %v822, %v797
    %825 = vrot.lane.b32.xlu0 %v820, 48
    %v826 = vpop.permute.xlu0 %825
    %v827 = vrot.slane %v826, 6
    %v828 = vsel %vm305, %v827, %v826
    %v830 = vadd.f32 %v810, %v828
    %832 = vrot.lane.b32.xlu0 %v823, 48
    %v833 = vpop.permute.xlu0 %832
    %v834 = vrot.slane %v833, 6
    %v835 = vsel %vm305, %v834, %v833
    %v837 = vadd.f32 %v817, %v835
    %s838 = sld [smem:[#allocation8 + $0x2d]]
    %v839 = vstv %s838
    %v840 = vmul.f32 %v839, %v796
    %s841 = sld [smem:[#allocation8 + $0x5e]]
    %v842 = vstv %s841
    %v843 = vmul.f32 %v842, %v797
    %845 = vrot.lane.b32.xlu0 %v840, 32
    %v846 = vpop.permute.xlu0 %845
    %v847 = vrot.slane %v846, 6
    %v848 = vsel %vm326, %v847, %v846
    %v850 = vadd.f32 %v830, %v848
    %852 = vrot.lane.b32.xlu0 %v843, 32
    %v853 = vpop.permute.xlu0 %852
    %v854 = vrot.slane %v853, 6
    %v855 = vsel %vm326, %v854, %v853
    %v857 = vadd.f32 %v837, %v855
    %v858 = vadd.f32 %v850, %v857
    %s859 = sld [smem:[#allocation8 + $0x4]]
    %v860 = vstv %s859
    %v861 = vmul.f32 %v860, %v726
    %s862 = sld [smem:[#allocation8 + $0x35]]
    %v863 = vstv %s862
    %v864 = vmul.f32 %v863, %v727
    %s865 = sld [smem:[#allocation8 + $0xb]]
    %v866 = vstv %s865
    %v867 = vmul.f32 %v866, %v726
    %s868 = sld [smem:[#allocation8 + $0x3c]]
    %v869 = vstv %s868
    %v870 = vmul.f32 %v869, %v727
    %872 = vrot.lane.b32.xlu0 %v867, 112
    %v873 = vpop.permute.xlu0 %872
    %v874 = vrot.slane %v873, 2
    %v875 = vsel %vm219, %v873, %v874
    %v877 = vadd.f32 %v861, %v875
    %879 = vrot.lane.b32.xlu0 %v870, 112
    %v880 = vpop.permute.xlu0 %879
    %v881 = vrot.slane %v880, 2
    %v882 = vsel %vm219, %v880, %v881
    %v884 = vadd.f32 %v864, %v882
    %s885 = sld [smem:[#allocation8 + $0x12]]
    %v886 = vstv %s885
    %v887 = vmul.f32 %v886, %v726
    %s888 = sld [smem:[#allocation8 + $0x43]]
    %v889 = vstv %s888
    %v890 = vmul.f32 %v889, %v727
    %892 = vrot.lane.b32.xlu0 %v887, 96
    %v893 = vpop.permute.xlu0 %892
    %v894 = vrot.slane %v893, 2
    %v895 = vsel %vm240, %v893, %v894
    %v897 = vadd.f32 %v877, %v895
    %899 = vrot.lane.b32.xlu0 %v890, 96
    %v900 = vpop.permute.xlu0 %899
    %v901 = vrot.slane %v900, 2
    %v902 = vsel %vm240, %v900, %v901
    %v904 = vadd.f32 %v884, %v902
    %s905 = sld [smem:[#allocation8 + $0x19]]
    %v906 = vstv %s905
    %v907 = vmul.f32 %v906, %v796
    %s908 = sld [smem:[#allocation8 + $0x4a]]
    %v909 = vstv %s908
    %v910 = vmul.f32 %v909, %v797
    %912 = vrot.lane.b32.xlu0 %v907, 80
    %v913 = vpop.permute.xlu0 %912
    %v914 = vrot.slane %v913, 6
    %v915 = vsel %vm261, %v914, %v913
    %v917 = vadd.f32 %v897, %v915
    %919 = vrot.lane.b32.xlu0 %v910, 80
    %v920 = vpop.permute.xlu0 %919
    %v921 = vrot.slane %v920, 6
    %v922 = vsel %vm261, %v921, %v920
    %v924 = vadd.f32 %v904, %v922
    %s925 = sld [smem:[#allocation8 + $0x20]]
    %v926 = vstv %s925
    %v927 = vmul.f32 %v926, %v796
    %s928 = sld [smem:[#allocation8 + $0x51]]
    %v929 = vstv %s928
    %v930 = vmul.f32 %v929, %v797
    %932 = vrot.lane.b32.xlu0 %v927, 64
    %v933 = vpop.permute.xlu0 %932
    %v934 = vrot.slane %v933, 6
    %v935 = vsel %vm284, %v934, %v933
    %v937 = vadd.f32 %v917, %v935
    %939 = vrot.lane.b32.xlu0 %v930, 64
    %v940 = vpop.permute.xlu0 %939
    %v941 = vrot.slane %v940, 6
    %v942 = vsel %vm284, %v941, %v940
    %v944 = vadd.f32 %v924, %v942
    %s945 = sld [smem:[#allocation8 + $0x27]]
    %v946 = vstv %s945
    %v947 = vmul.f32 %v946, %v796
    %s948 = sld [smem:[#allocation8 + $0x58]]
    %v949 = vstv %s948
    %v950 = vmul.f32 %v949, %v797
    %952 = vrot.lane.b32.xlu0 %v947, 48
    %v953 = vpop.permute.xlu0 %952
    %v954 = vrot.slane %v953, 6
    %v955 = vsel %vm305, %v954, %v953
    %v957 = vadd.f32 %v937, %v955
    %959 = vrot.lane.b32.xlu0 %v950, 48
    %v960 = vpop.permute.xlu0 %959
    %v961 = vrot.slane %v960, 6
    %v962 = vsel %vm305, %v961, %v960
    %v964 = vadd.f32 %v944, %v962
    %s965 = sld [smem:[#allocation8 + $0x2e]]
    %v966 = vstv %s965
    %v967 = vmul.f32 %v966, %v796
    %s968 = sld [smem:[#allocation8 + $0x5f]]
    %v969 = vstv %s968
    %v970 = vmul.f32 %v969, %v797
    %972 = vrot.lane.b32.xlu0 %v967, 32
    %v973 = vpop.permute.xlu0 %972
    %v974 = vrot.slane %v973, 6
    %v975 = vsel %vm326, %v974, %v973
    %v977 = vadd.f32 %v957, %v975
    %979 = vrot.lane.b32.xlu0 %v970, 32
    %v980 = vpop.permute.xlu0 %979
    %v981 = vrot.slane %v980, 6
    %v982 = vsel %vm326, %v981, %v980
    %v984 = vadd.f32 %v964, %v982
    %v985 = vadd.f32 %v977, %v984
    %v986 = vadd.s32 %v199, 1
    %v987 = vadd.s32 %v200, 1
    %vm988 = vcmp.ge.s32.totalorder %v986, 0
    %vm989 = vcmp.ge.s32.totalorder %v987, 0
    %vm990 = vcmp.lt.s32.totalorder %v986, 16
    %vm991 = vcmp.lt.s32.totalorder %v987, 16
    %vm992 = vmand %vm988, %vm990
    %vm993 = vmand %vm989, %vm991
    %v994 = vsel %vm992, 1, 0
    %v995 = vsel %vm993, 1, 0
    %vm996 = vcmp.eq.s32.totalorder %v994, 1
    %vm997 = vcmp.eq.s32.totalorder %v995, 1
    %v999 = vcombine.high %v985, %v985
    %v1001 = vunpack.c.l.s4 1983009808
    %v1002 = vunpack.c.0.s8 %v1001
    %v1003 = vlaneseq
    %v1004 = vshrl.u32 %v1003, 7
    %v1005 = vsub.s32 %v1002, %v1004
    %v1006 = vrot.slane %v985, %v1005
    %v1008 = vunpack.c.l.s4 1983009808
    %v1009 = vunpack.c.0.s8 %v1008
    %v1010 = vlaneseq
    %v1011 = vshrl.u32 %v1010, 7
    %v1012 = vsub.s32 %v1009, %v1011
    %v1013 = vrot.slane %v999, %v1012
    %v1014 = vcombine.high %v1006, %v1006
    %1015 = vrot.lane.b32.xlu0 %v1006, 47
    %v1016 = vpop.permute.xlu0 %1015
    %1017 = vrot.lane.b32.xlu0 %v1014, 47
    %v1018 = vpop.permute.xlu0 %1017
    %1019 = vrot.lane.b32.xlu0 %v1013, 47
    %v1020 = vpop.permute.xlu0 %1019
    %vm1021 = vcmask 384000
    %v1022 = vsel %vm1021, %v1016, %v1018
    %v1023 = vsel %vm1021, %v1018, %v1020
    %v1026 = vsel %vm996, %v1022, 0.0
    %v1027 = vsel %vm997, %v1023, 0.0
    %v1028 = vld [vmem:[#allocation2] sm:$0x3f]
    %v1029 = vld [vmem:[#allocation3] sm:$0x3f]
    %s1030 = sld [smem:[#allocation8 + $0x5]]
    %v1031 = vstv %s1030
    %v1032 = vmul.f32 %v1031, %v1028
    %s1033 = sld [smem:[#allocation8 + $0x36]]
    %v1034 = vstv %s1033
    %v1035 = vmul.f32 %v1034, %v1029
    %s1036 = sld [smem:[#allocation8 + $0xc]]
    %v1037 = vstv %s1036
    %v1038 = vmul.f32 %v1037, %v1028
    %s1039 = sld [smem:[#allocation8 + $0x3d]]
    %v1040 = vstv %s1039
    %v1041 = vmul.f32 %v1040, %v1029
    %1043 = vrot.lane.b32.xlu0 %v1038, 112
    %v1044 = vpop.permute.xlu0 %1043
    %v1045 = vrot.slane %v1044, 2
    %v1046 = vsel %vm219, %v1044, %v1045
    %v1048 = vadd.f32 %v1032, %v1046
    %1050 = vrot.lane.b32.xlu0 %v1041, 112
    %v1051 = vpop.permute.xlu0 %1050
    %v1052 = vrot.slane %v1051, 2
    %v1053 = vsel %vm219, %v1051, %v1052
    %v1055 = vadd.f32 %v1035, %v1053
    %s1056 = sld [smem:[#allocation8 + $0x13]]
    %v1057 = vstv %s1056
    %v1058 = vmul.f32 %v1057, %v1028
    %s1059 = sld [smem:[#allocation8 + $0x44]]
    %v1060 = vstv %s1059
    %v1061 = vmul.f32 %v1060, %v1029
    %1063 = vrot.lane.b32.xlu0 %v1058, 96
    %v1064 = vpop.permute.xlu0 %1063
    %v1065 = vrot.slane %v1064, 2
    %v1066 = vsel %vm240, %v1064, %v1065
    %v1068 = vadd.f32 %v1048, %v1066
    %1070 = vrot.lane.b32.xlu0 %v1061, 96
    %v1071 = vpop.permute.xlu0 %1070
    %v1072 = vrot.slane %v1071, 2
    %v1073 = vsel %vm240, %v1071, %v1072
    %v1075 = vadd.f32 %v1055, %v1073
    %v1076 = vld [vmem:[#allocation2 + $0x2] sm:$0x3f]
    %v1077 = vld [vmem:[#allocation3 + $0x2] sm:$0x3f]
    %s1078 = sld [smem:[#allocation8 + $0x1a]]
    %v1079 = vstv %s1078
    %v1080 = vmul.f32 %v1079, %v1076
    %s1081 = sld [smem:[#allocation8 + $0x4b]]
    %v1082 = vstv %s1081
    %v1083 = vmul.f32 %v1082, %v1077
    %1085 = vrot.lane.b32.xlu0 %v1080, 80
    %v1086 = vpop.permute.xlu0 %1085
    %v1087 = vrot.slane %v1086, 6
    %v1088 = vsel %vm261, %v1087, %v1086
    %v1090 = vadd.f32 %v1068, %v1088
    %1092 = vrot.lane.b32.xlu0 %v1083, 80
    %v1093 = vpop.permute.xlu0 %1092
    %v1094 = vrot.slane %v1093, 6
    %v1095 = vsel %vm261, %v1094, %v1093
    %v1097 = vadd.f32 %v1075, %v1095
    %s1098 = sld [smem:[#allocation8 + $0x21]]
    %v1099 = vstv %s1098
    %v1100 = vmul.f32 %v1099, %v1076
    %s1101 = sld [smem:[#allocation8 + $0x52]]
    %v1102 = vstv %s1101
    %v1103 = vmul.f32 %v1102, %v1077
    %1105 = vrot.lane.b32.xlu0 %v1100, 64
    %v1106 = vpop.permute.xlu0 %1105
    %v1107 = vrot.slane %v1106, 6
    %v1108 = vsel %vm284, %v1107, %v1106
    %v1110 = vadd.f32 %v1090, %v1108
    %1112 = vrot.lane.b32.xlu0 %v1103, 64
    %v1113 = vpop.permute.xlu0 %1112
    %v1114 = vrot.slane %v1113, 6
    %v1115 = vsel %vm284, %v1114, %v1113
    %v1117 = vadd.f32 %v1097, %v1115
    %s1118 = sld [smem:[#allocation8 + $0x28]]
    %v1119 = vstv %s1118
    %v1120 = vmul.f32 %v1119, %v1076
    %s1121 = sld [smem:[#allocation8 + $0x59]]
    %v1122 = vstv %s1121
    %v1123 = vmul.f32 %v1122, %v1077
    %1125 = vrot.lane.b32.xlu0 %v1120, 48
    %v1126 = vpop.permute.xlu0 %1125
    %v1127 = vrot.slane %v1126, 6
    %v1128 = vsel %vm305, %v1127, %v1126
    %v1130 = vadd.f32 %v1110, %v1128
    %1132 = vrot.lane.b32.xlu0 %v1123, 48
    %v1133 = vpop.permute.xlu0 %1132
    %v1134 = vrot.slane %v1133, 6
    %v1135 = vsel %vm305, %v1134, %v1133
    %v1137 = vadd.f32 %v1117, %v1135
    %s1138 = sld [smem:[#allocation8 + $0x2f]]
    %v1139 = vstv %s1138
    %v1140 = vmul.f32 %v1139, %v1076
    %s1141 = sld [smem:[#allocation8 + $0x60]]
    %v1142 = vstv %s1141
    %v1143 = vmul.f32 %v1142, %v1077
    %1145 = vrot.lane.b32.xlu0 %v1140, 32
    %v1146 = vpop.permute.xlu0 %1145
    %v1147 = vrot.slane %v1146, 6
    %v1148 = vsel %vm326, %v1147, %v1146
    %v1150 = vadd.f32 %v1130, %v1148
    %1152 = vrot.lane.b32.xlu0 %v1143, 32
    %v1153 = vpop.permute.xlu0 %1152
    %v1154 = vrot.slane %v1153, 6
    %v1155 = vsel %vm326, %v1154, %v1153
    %v1157 = vadd.f32 %v1137, %v1155
    %v1158 = vadd.f32 %v1150, %v1157
    %v1159 = vadd.s32 %v199, 2
    %v1160 = vadd.s32 %v200, 2
    %vm1161 = vcmp.ge.s32.totalorder %v1159, 0
    %vm1162 = vcmp.ge.s32.totalorder %v1160, 0
    %vm1163 = vcmp.lt.s32.totalorder %v1159, 16
    %vm1164 = vcmp.lt.s32.totalorder %v1160, 16
    %vm1165 = vmand %vm1161, %vm1163
    %vm1166 = vmand %vm1162, %vm1164
    %v1167 = vsel %vm1165, 1, 0
    %v1168 = vsel %vm1166, 1, 0
    %vm1169 = vcmp.eq.s32.totalorder %v1167, 1
    %vm1170 = vcmp.eq.s32.totalorder %v1168, 1
    %v1172 = vcombine.high %v1158, %v1158
    %v1174 = vunpack.c.l.s4 1983009808
    %v1175 = vunpack.c.0.s8 %v1174
    %v1176 = vlaneseq
    %v1177 = vshrl.u32 %v1176, 7
    %v1178 = vsub.s32 %v1175, %v1177
    %v1179 = vrot.slane %v1158, %v1178
    %v1181 = vunpack.c.l.s4 1983009808
    %v1182 = vunpack.c.0.s8 %v1181
    %v1183 = vlaneseq
    %v1184 = vshrl.u32 %v1183, 7
    %v1185 = vsub.s32 %v1182, %v1184
    %v1186 = vrot.slane %v1172, %v1185
    %v1187 = vcombine.high %v1179, %v1179
    %1188 = vrot.lane.b32.xlu0 %v1179, 46
    %v1189 = vpop.permute.xlu0 %1188
    %1190 = vrot.lane.b32.xlu0 %v1187, 46
    %v1191 = vpop.permute.xlu0 %1190
    %1192 = vrot.lane.b32.xlu0 %v1186, 46
    %v1193 = vpop.permute.xlu0 %1192
    %vm1194 = vcmask 375808
    %v1195 = vsel %vm1194, %v1189, %v1191
    %v1196 = vsel %vm1194, %v1191, %v1193
    %v1199 = vsel %vm1169, %v1195, 0.0
    %v1200 = vsel %vm1170, %v1196, 0.0
    %v1201 = vld [vmem:[#allocation2] sm:$0x3f]
    %v1202 = vld [vmem:[#allocation3] sm:$0x3f]
    %s1203 = sld [smem:[#allocation8 + $0x6]]
    %v1204 = vstv %s1203
    %v1205 = vmul.f32 %v1204, %v1201
    %s1206 = sld [smem:[#allocation8 + $0x37]]
    %v1207 = vstv %s1206
    %v1208 = vmul.f32 %v1207, %v1202
    %s1209 = sld [smem:[#allocation8 + $0xd]]
    %v1210 = vstv %s1209
    %v1211 = vmul.f32 %v1210, %v1201
    %s1212 = sld [smem:[#allocation8 + $0x3e]]
    %v1213 = vstv %s1212
    %v1214 = vmul.f32 %v1213, %v1202
    %1216 = vrot.lane.b32.xlu0 %v1211, 112
    %v1217 = vpop.permute.xlu0 %1216
    %v1218 = vrot.slane %v1217, 2
    %v1219 = vsel %vm219, %v1217, %v1218
    %v1221 = vadd.f32 %v1205, %v1219
    %1223 = vrot.lane.b32.xlu0 %v1214, 112
    %v1224 = vpop.permute.xlu0 %1223
    %v1225 = vrot.slane %v1224, 2
    %v1226 = vsel %vm219, %v1224, %v1225
    %v1228 = vadd.f32 %v1208, %v1226
    %s1229 = sld [smem:[#allocation8 + $0x14]]
    %v1230 = vstv %s1229
    %v1231 = vmul.f32 %v1230, %v1201
    %s1232 = sld [smem:[#allocation8 + $0x45]]
    %v1233 = vstv %s1232
    %v1234 = vmul.f32 %v1233, %v1202
    %1236 = vrot.lane.b32.xlu0 %v1231, 96
    %v1237 = vpop.permute.xlu0 %1236
    %v1238 = vrot.slane %v1237, 2
    %v1239 = vsel %vm240, %v1237, %v1238
    %v1241 = vadd.f32 %v1221, %v1239
    %1243 = vrot.lane.b32.xlu0 %v1234, 96
    %v1244 = vpop.permute.xlu0 %1243
    %v1245 = vrot.slane %v1244, 2
    %v1246 = vsel %vm240, %v1244, %v1245
    %v1248 = vadd.f32 %v1228, %v1246
    %v1249 = vld [vmem:[#allocation2 + $0x2] sm:$0x3f]
    %v1250 = vld [vmem:[#allocation3 + $0x2] sm:$0x3f]
    %s1251 = sld [smem:[#allocation8 + $0x1b]]
    %v1252 = vstv %s1251
    %v1253 = vmul.f32 %v1252, %v1249
    %s1254 = sld [smem:[#allocation8 + $0x4c]]
    %v1255 = vstv %s1254
    %v1256 = vmul.f32 %v1255, %v1250
    %1258 = vrot.lane.b32.xlu0 %v1253, 80
    %v1259 = vpop.permute.xlu0 %1258
    %v1260 = vrot.slane %v1259, 6
    %v1261 = vsel %vm261, %v1260, %v1259
    %v1263 = vadd.f32 %v1241, %v1261
    %1265 = vrot.lane.b32.xlu0 %v1256, 80
    %v1266 = vpop.permute.xlu0 %1265
    %v1267 = vrot.slane %v1266, 6
    %v1268 = vsel %vm261, %v1267, %v1266
    %v1270 = vadd.f32 %v1248, %v1268
    %s1271 = sld [smem:[#allocation8 + $0x22]]
    %v1272 = vstv %s1271
    %v1273 = vmul.f32 %v1272, %v1249
    %s1274 = sld [smem:[#allocation8 + $0x53]]
    %v1275 = vstv %s1274
    %v1276 = vmul.f32 %v1275, %v1250
    %1278 = vrot.lane.b32.xlu0 %v1273, 64
    %v1279 = vpop.permute.xlu0 %1278
    %v1280 = vrot.slane %v1279, 6
    %v1281 = vsel %vm284, %v1280, %v1279
    %v1283 = vadd.f32 %v1263, %v1281
    %1285 = vrot.lane.b32.xlu0 %v1276, 64
    %v1286 = vpop.permute.xlu0 %1285
    %v1287 = vrot.slane %v1286, 6
    %v1288 = vsel %vm284, %v1287, %v1286
    %v1290 = vadd.f32 %v1270, %v1288
    %s1291 = sld [smem:[#allocation8 + $0x29]]
    %v1292 = vstv %s1291
    %v1293 = vmul.f32 %v1292, %v1249
    %s1294 = sld [smem:[#allocation8 + $0x5a]]
    %v1295 = vstv %s1294
    %v1296 = vmul.f32 %v1295, %v1250
    %1298 = vrot.lane.b32.xlu0 %v1293, 48
    %v1299 = vpop.permute.xlu0 %1298
    %v1300 = vrot.slane %v1299, 6
    %v1301 = vsel %vm305, %v1300, %v1299
    %v1303 = vadd.f32 %v1283, %v1301
    %1305 = vrot.lane.b32.xlu0 %v1296, 48
    %v1306 = vpop.permute.xlu0 %1305
    %v1307 = vrot.slane %v1306, 6
    %v1308 = vsel %vm305, %v1307, %v1306
    %v1310 = vadd.f32 %v1290, %v1308
    %s1311 = sld [smem:[#allocation8 + $0x30]]
    %v1312 = vstv %s1311
    %v1313 = vmul.f32 %v1312, %v1249
    %s1314 = sld [smem:[#allocation8 + $0x61]]
    %v1315 = vstv %s1314
    %v1316 = vmul.f32 %v1315, %v1250
    %1318 = vrot.lane.b32.xlu0 %v1313, 32
    %v1319 = vpop.permute.xlu0 %1318
    %v1320 = vrot.slane %v1319, 6
    %v1321 = vsel %vm326, %v1320, %v1319
    %v1323 = vadd.f32 %v1303, %v1321
    %1325 = vrot.lane.b32.xlu0 %v1316, 32
    %v1326 = vpop.permute.xlu0 %1325
    %v1327 = vrot.slane %v1326, 6
    %v1328 = vsel %vm326, %v1327, %v1326
    %v1330 = vadd.f32 %v1310, %v1328
    %v1331 = vadd.f32 %v1323, %v1330
    %v1332 = vadd.s32 %v199, 3
    %v1333 = vadd.s32 %v200, 3
    %vm1334 = vcmp.ge.s32.totalorder %v1332, 0
    %vm1335 = vcmp.ge.s32.totalorder %v1333, 0
    %vm1336 = vcmp.lt.s32.totalorder %v1332, 16
    %vm1337 = vcmp.lt.s32.totalorder %v1333, 16
    %vm1338 = vmand %vm1334, %vm1336
    %vm1339 = vmand %vm1335, %vm1337
    %v1340 = vsel %vm1338, 1, 0
    %v1341 = vsel %vm1339, 1, 0
    %vm1342 = vcmp.eq.s32.totalorder %v1340, 1
    %vm1343 = vcmp.eq.s32.totalorder %v1341, 1
    %v1345 = vcombine.high %v1331, %v1331
    %v1347 = vunpack.c.l.s4 1983009808
    %v1348 = vunpack.c.0.s8 %v1347
    %v1349 = vlaneseq
    %v1350 = vshrl.u32 %v1349, 7
    %v1351 = vsub.s32 %v1348, %v1350
    %v1352 = vrot.slane %v1331, %v1351
    %v1354 = vunpack.c.l.s4 1983009808
    %v1355 = vunpack.c.0.s8 %v1354
    %v1356 = vlaneseq
    %v1357 = vshrl.u32 %v1356, 7
    %v1358 = vsub.s32 %v1355, %v1357
    %v1359 = vrot.slane %v1345, %v1358
    %v1360 = vcombine.high %v1352, %v1352
    %1361 = vrot.lane.b32.xlu0 %v1352, 45
    %v1362 = vpop.permute.xlu0 %1361
    %1363 = vrot.lane.b32.xlu0 %v1360, 45
    %v1364 = vpop.permute.xlu0 %1363
    %1365 = vrot.lane.b32.xlu0 %v1359, 45
    %v1366 = vpop.permute.xlu0 %1365
    %vm1367 = vcmask 367616
    %v1368 = vsel %vm1367, %v1362, %v1364
    %v1369 = vsel %vm1367, %v1364, %v1366
    %v1372 = vsel %vm1342, %v1368, 0.0
    %v1373 = vsel %vm1343, %v1369, 0.0
    %v1374 = vadd.f32 %v378, %v551
    %v1375 = vadd.f32 %v379, %v552
    %v1377 = vcombine.high %v858, %v858
    %v1379 = vunpack.c.l.s4 1983009808
    %v1380 = vunpack.c.0.s8 %v1379
    %v1381 = vlaneseq
    %v1382 = vshrl.u32 %v1381, 7
    %v1383 = vsub.s32 %v1380, %v1382
    %v1384 = vrot.slane %v858, %v1383
    %v1386 = vunpack.c.l.s4 1983009808
    %v1387 = vunpack.c.0.s8 %v1386
    %v1388 = vlaneseq
    %v1389 = vshrl.u32 %v1388, 7
    %v1390 = vsub.s32 %v1387, %v1389
    %v1391 = vrot.slane %v1377, %v1390
    %v1392 = vcombine.high %v1384, %v1384
    %1393 = vrot.lane.b32.xlu0 %v1384, 48
    %v1394 = vpop.permute.xlu0 %1393
    %1395 = vrot.lane.b32.xlu0 %v1392, 48
    %v1396 = vpop.permute.xlu0 %1395
    %1397 = vrot.lane.b32.xlu0 %v1391, 48
    %v1398 = vpop.permute.xlu0 %1397
    %v1399 = vsel %vm305, %v1394, %v1396
    %v1400 = vsel %vm305, %v1396, %v1398
    %v1403 = vadd.f32 %v724, %v1399
    %v1404 = vadd.f32 %v725, %v1400
    %v1405 = vadd.f32 %v1026, %v1199
    %v1406 = vadd.f32 %v1027, %v1200
    %v1407 = vadd.f32 %v1374, %v1403
    %v1408 = vadd.f32 %v1375, %v1404
    %v1409 = vadd.f32 %v1405, %v1372
    %v1410 = vadd.f32 %v1406, %v1373
    %v1411 = vadd.f32 %v1407, %v1409
    %v1412 = vadd.f32 %v1408, %v1410
    %v1413 = vxor.u32 %v1411, 2147483648
    %v1414 = vxor.u32 %v1412, 2147483648
    %v1415 = vmul.f32 %v1413, 1.442695
    %v1416 = vpow.pop %v1415
    %v1417 = vmul.f32 %v1414, 1.442695
    %v1418 = vpow.pop %v1417
    %v1419 = vadd.f32 %v1416, 1.0
    %v1420 = vadd.f32 %v1418, 1.0
    %v1421 = vrcp.pop %v1419
    %v1422 = vmul.f32 1.0, %v1421
    %v1423 = vrcp.pop %v1420
    %v1424 = vmul.f32 1.0, %v1423
    %v1427 = vcombine.low %v1422, %v1424
    %v1429 = vunpack.c.l.s4 1983009808
    %v1430 = vunpack.c.0.s8 %v1429
    %v1431 = vlaneseq
    %v1432 = vshrl.u32 %v1431, 7
    %v1433 = vsub.s32 %v1430, %v1432
    %v1434 = vrot.slane %v1427, %v1433
    %1436 = vst [vmem:[#allocation9] sm:$0xf] %v1434
    // Predicated region
    $region18: #{tpu_custom_call.1} parent=1 // pred_check
      _
    $region19: #{tpu_custom_call.1} parent=1 // pred_check_branch
      %1438 = sbr.rel (0) target = $region21
    $region20: #{tpu_custom_call.1} parent=1 // pred_region
      %s1440 = ssub.s32 64, 64
      %1441 = vsyncadd [#allocation6], %s1440
      %s1443 = sshll.u32 [#allocation9], 4
      %s1444 = int_to_ptr.vmem [resolvable:$true] %s1443
      %1446 = dma.vmem_to_hbm [thread:$0]  %s1444, 64, %s2, [#allocation6]
    $region21: #{tpu_custom_call.1} parent=1 // pred_fallthru
      _
    // Predicated region
    $region22: #{tpu_custom_call.1} parent=1 // pred_check
      _
    $region23: #{tpu_custom_call.1} parent=1 // pred_check_branch
      %1448 = sbr.rel (0) target = $region25
    $region24: #{tpu_custom_call.1} parent=1 // pred_region
      %1449 = dma.done [#allocation6], 64
    $region25: #{tpu_custom_call.1} parent=1 // pred_fallthru
      _
    %1450 = vsyncpa [#allocation5], 1
    %1451 = vsyncpa [#allocation6], 1
    %1452 = vsyncpa [#allocation7], 1

</llo_original>
